<compile_context>
chip_gen: v6e
topology: v6e:2x2x1
jax: 0.10.0
libtpu: 0.0.40
codegen_flags: <defaults>
</compile_context>

<pallas_src>
import numpy as np
import jax
import jax.numpy as jnp
from jax.experimental import pallas as pl
from jax.experimental.pallas import tpu as pltpu

INPUT_DIM = 16
HIDDEN_DIMS = (32, 32)
OUTPUT_DIM = 8
BATCH = 4
SEQ = 8
LN_EPS = 1e-5

VEC_W = 128          # lane width of the packed vector-parameter array
VEC_ROWS = 16        # padded sublane count (11 rows used)
SLAB = 128           # lane width of the packed per-step output slab

# rows of the packed "vec" parameter array
R_PRE_B, R_PRE_G, R_PRE_BETA = 0, 1, 2
R_GI_BIAS, R_GH_BIAS = 3, 4
R_GRU_G, R_GRU_BETA = 5, 6
R_POST_B, R_POST_G, R_POST_BETA = 7, 8, 9
R_OUT_B = 10


# ----------------------------- Pallas kernel --------------------------------
def rnnbase_kernel(x_ref, h0_ref, w_pre_ref, w_ih_ref, w_hh_ref,
                   w_post_ref, w_out_ref, vec_ref, y_ref, gi_scr, h_all_scr):
    H, H1 = HIDDEN_DIMS
    Bp = h0_ref.shape[0]
    TB = x_ref.shape[0]
    T = TB // Bp

    def ln(v, g, b):
        m = jnp.mean(v, axis=-1, keepdims=True)
        c = v - m
        var = jnp.mean(c * c, axis=-1, keepdims=True)
        return c * jax.lax.rsqrt(var + LN_EPS) * g + b

    # -------- batched pre stage: all T timesteps as one 64-row matmul -------
    x = x_ref[...]                                           # (TB, INPUT_DIM)
    m = jnp.mean(x, axis=-1, keepdims=True)
    c = x - m
    var = jnp.mean(c * c, axis=-1, keepdims=True)
    xn = c * jax.lax.rsqrt(var + LN_EPS)     # input LN (affine folded into w_pre)

    z = jnp.dot(xn, w_pre_ref[...], preferred_element_type=jnp.float32)
    z = z + vec_ref[R_PRE_B:R_PRE_B + 1, :H]
    z = ln(z, vec_ref[R_PRE_G:R_PRE_G + 1, :H],
           vec_ref[R_PRE_BETA:R_PRE_BETA + 1, :H])
    z = jnp.maximum(z, 0.0)                                  # (TB, H)

    # GRU input-side product for every timestep, cols [r_i | z_i | n_i | 0]
    gi_all = jnp.dot(z, w_ih_ref[...], preferred_element_type=jnp.float32)
    gi_all = gi_all + vec_ref[R_GI_BIAS:R_GI_BIAS + 1, :]
    gi_scr[...] = gi_all                                     # (TB, 128)

    # -------- serial GRU recurrence (the only per-step work) ----------------
    w_hh = w_hh_ref[...]                                     # (H, 128) resident
    gh_bias_b = jnp.broadcast_to(vec_ref[R_GH_BIAS:R_GH_BIAS + 1, :], (Bp, VEC_W))
    gru_g_b = jnp.broadcast_to(vec_ref[R_GRU_G:R_GRU_G + 1, :H], (Bp, H))
    gru_b_b = jnp.broadcast_to(vec_ref[R_GRU_BETA:R_GRU_BETA + 1, :H], (Bp, H))

    def step(t, h):
        idx = pl.multiple_of(t * Bp, Bp)
        gi = gi_scr[pl.ds(idx, Bp), :]                       # (Bp, 128)
        gh = jnp.dot(h, w_hh, preferred_element_type=jnp.float32) + gh_bias_b
        s = gi + gh
        r = jax.nn.sigmoid(s[:, :H])
        u = jax.nn.sigmoid(s[:, H:2 * H])
        n = jnp.tanh(gi[:, 2 * H:3 * H] + r * gh[:, 2 * H:3 * H])
        h_new = (1.0 - u) * n + u * h
        # GRULayer LayerNorm (applied to the carried hidden state)
        mm = jnp.mean(h_new, axis=-1, keepdims=True)
        cc = h_new - mm
        vv = jnp.mean(cc * cc, axis=-1, keepdims=True)
        h_out = cc * jax.lax.rsqrt(vv + LN_EPS) * gru_g_b + gru_b_b
        h_all_scr[pl.ds(idx, Bp), :] = h_out
        return h_out

    jax.lax.fori_loop(0, T, step, h0_ref[...], unroll=True)

    # -------- batched post stage: all T timesteps as 64-row matmuls ---------
    h_all = h_all_scr[...]                                   # (TB, H)
    y = jnp.dot(h_all, w_post_ref[...], preferred_element_type=jnp.float32)
    y = y + vec_ref[R_POST_B:R_POST_B + 1, :H1]
    y = ln(y, vec_ref[R_POST_G:R_POST_G + 1, :H1],
           vec_ref[R_POST_BETA:R_POST_BETA + 1, :H1])
    y = jnp.maximum(y, 0.0)                                  # (TB, H1)

    # final FC directly into the 128-lane slab: cols [H, H+OUT) hold the output
    slab = jnp.dot(y, w_out_ref[...], preferred_element_type=jnp.float32)
    slab = slab + vec_ref[R_OUT_B:R_OUT_B + 1, :]
    slab = slab + jnp.concatenate(
        [h_all, jnp.zeros((TB, SLAB - H), jnp.float32)], axis=1)
    y_ref[...] = slab                                        # single unmasked store


def rnnbase_forward(x_seq, h0, packed):
    """x_seq: (T, B, INPUT_DIM), h0: (B, H). Returns (out_seq (T,B,OUT),
    hid_seq (T,B,H)); hid_seq[-1] is the final hidden state."""
    T, B, _ = x_seq.shape
    H, H1 = HIDDEN_DIMS
    Bp = ((B + 7) // 8) * 8
    TB = T * Bp

    x_pad = jnp.pad(x_seq, ((0, 0), (0, Bp - B), (0, 0)))
    x_flat = x_pad.reshape(TB, INPUT_DIM)
    h0_pad = jnp.pad(h0, ((0, Bp - B), (0, 0)))

    grid_spec = pltpu.PrefetchScalarGridSpec(
        num_scalar_prefetch=0,
        grid=(1,),
        in_specs=[
            pl.BlockSpec((TB, INPUT_DIM), lambda i: (0, 0)),     # x (all steps)
            pl.BlockSpec((Bp, H), lambda i: (0, 0)),             # h0
            pl.BlockSpec((INPUT_DIM, H), lambda i: (0, 0)),      # w_pre (LN folded)
            pl.BlockSpec((H, VEC_W), lambda i: (0, 0)),          # w_ih  [r|z|n|0]
            pl.BlockSpec((H, VEC_W), lambda i: (0, 0)),          # w_hh  [r|z|n|0]
            pl.BlockSpec((H, H1), lambda i: (0, 0)),             # w_post
            pl.BlockSpec((H1, SLAB), lambda i: (0, 0)),          # w_out (128-lane)
            pl.BlockSpec((VEC_ROWS, VEC_W), lambda i: (0, 0)),   # packed vec params
        ],
        out_specs=pl.BlockSpec((TB, SLAB), lambda i: (0, 0)),
        scratch_shapes=[pltpu.VMEM((TB, VEC_W), jnp.float32),    # gi for all steps
                        pltpu.VMEM((TB, H), jnp.float32)],       # hidden for all steps
    )

    slab = pl.pallas_call(
        rnnbase_kernel,
        out_shape=jax.ShapeDtypeStruct((TB, SLAB), jnp.float32),
        grid_spec=grid_spec,
        compiler_params=pltpu.CompilerParams(
            dimension_semantics=("arbitrary",)),
    )(x_flat, h0_pad, packed["w_pre"], packed["w_ih"], packed["w_hh"],
      packed["w_post"], packed["w_out"], packed["vec"])

    slab = slab.reshape(T, Bp, SLAB)
    hid_seq = slab[:, :B, :H]
    out_seq = slab[:, :B, H:H + OUTPUT_DIM]
    return out_seq, hid_seq


# --------------------------- init & parameter packing ------------------------
def _orthogonal(key, rows, cols, gain):
    """Mimics torch.nn.init.orthogonal_ (gain * Q from QR of a Gaussian)."""
    a = jax.random.normal(key, (max(rows, cols), min(rows, cols)), jnp.float32)
    q, r = jnp.linalg.qr(a)
    q = q * jnp.sign(jnp.diagonal(r))
    if rows < cols:
        q = q.T
    return gain * q[:rows, :cols]


def init_raw_params(key):
    """Torch-like parameters (linear weights stored transposed as (in, out)).
    LN/bias values are perturbed away from the torch defaults (1/0) so that the
    affine-folding and bias-fusion paths are actually exercised."""
    H0, H1 = HIDDEN_DIMS
    ks = jax.random.split(key, 18)
    gain = np.sqrt(2.0)
    kk = 1.0 / np.sqrt(H0)
    nrm = lambda k, s: jax.random.normal(k, s, jnp.float32)
    return dict(
        ln_in_g=1.0 + 0.1 * nrm(ks[0], (1, INPUT_DIM)),
        ln_in_b=0.1 * nrm(ks[1], (1, INPUT_DIM)),
        pre_w=_orthogonal(ks[2], H0, INPUT_DIM, gain).T,
        pre_b=0.1 * nrm(ks[3], (1, H0)),
        pre_ln_g=1.0 + 0.1 * nrm(ks[4], (1, H0)),
        pre_ln_b=0.1 * nrm(ks[5], (1, H0)),
        gru_wih=jax.random.uniform(ks[6], (3 * H0, H0), jnp.float32, -kk, kk).T,  # (H0,3H0) cols [r|z|n]
        gru_whh=jax.random.uniform(ks[7], (3 * H0, H0), jnp.float32, -kk, kk).T,
        gru_bih=jax.random.uniform(ks[8], (1, 3 * H0), jnp.float32, -kk, kk),
        gru_bhh=jax.random.uniform(ks[9], (1, 3 * H0), jnp.float32, -kk, kk),
        gru_ln_g=1.0 + 0.1 * nrm(ks[10], (1, H0)),
        gru_ln_b=0.1 * nrm(ks[11], (1, H0)),
        post1_w=_orthogonal(ks[12], H1, H0, gain).T,
        post1_b=0.1 * nrm(ks[13], (1, H1)),
        post1_ln_g=1.0 + 0.1 * nrm(ks[14], (1, H1)),
        post1_ln_b=0.1 * nrm(ks[15], (1, H1)),
        out_w=_orthogonal(ks[16], OUTPUT_DIM, H1, gain).T,
        out_b=0.1 * nrm(ks[17], (1, OUTPUT_DIM)),
    )


def pack_params(p):
    """Fold input-LN affine into the pre layer, split the GRU weights into
    128-lane-padded input-side / hidden-side matrices, pad the final FC weight
    to the 128-lane slab layout, and pack all vector params into one row array."""
    H, H1 = HIDDEN_DIMS
    assert 3 * H <= VEC_W and H + OUTPUT_DIM <= SLAB

    # fold: LN(x)*g + b followed by Linear(W, c)  ==  norm(x) @ (diag(g)W) + (bW + c)
    w_pre_eff = p["ln_in_g"].reshape(-1, 1) * p["pre_w"]           # (D_in, H)
    pre_b_eff = p["pre_b"] + p["ln_in_b"] @ p["pre_w"]             # (1, H)

    pad_lanes = lambda w: jnp.pad(w, ((0, 0), (0, VEC_W - w.shape[1])))
    w_ih = pad_lanes(p["gru_wih"])                                 # (H, 128) [r_i|z_i|n_i|0]
    w_hh = pad_lanes(p["gru_whh"])                                 # (H, 128) [r_h|z_h|n_h|0]

    bih, bhh = p["gru_bih"], p["gru_bhh"]
    gi_bias = jnp.concatenate([bih[:, :2 * H] + bhh[:, :2 * H],    # r,z biases fused
                               bih[:, 2 * H:]], axis=1)            # n input-side bias
    gh_bias = jnp.concatenate([jnp.zeros((1, 2 * H), jnp.float32),
                               bhh[:, 2 * H:]], axis=1)            # n hidden-side bias

    # final FC weight/bias placed at slab columns [H, H+OUT)
    w_out_pad = jnp.zeros((H1, SLAB), jnp.float32)
    w_out_pad = w_out_pad.at[:, H:H + OUTPUT_DIM].set(p["out_w"])
    out_b_pad = jnp.zeros((1, SLAB), jnp.float32)
    out_b_pad = out_b_pad.at[:, H:H + OUTPUT_DIM].set(p["out_b"])

    def row(v):
        return jnp.pad(v, ((0, 0), (0, VEC_W - v.shape[1])))

    vec = jnp.concatenate([
        row(pre_b_eff), row(p["pre_ln_g"]), row(p["pre_ln_b"]),
        row(gi_bias), row(gh_bias),
        row(p["gru_ln_g"]), row(p["gru_ln_b"]),
        row(p["post1_b"]), row(p["post1_ln_g"]), row(p["post1_ln_b"]),
        row(out_b_pad),
    ], axis=0)
    vec = jnp.pad(vec, ((0, VEC_ROWS - vec.shape[0]), (0, 0)))     # (16, 128)

    return dict(w_pre=w_pre_eff, w_ih=w_ih, w_hh=w_hh,
                w_post=p["post1_w"], w_out=w_out_pad, vec=vec)


# ------------------------------ JAX reference --------------------------------
def _ln_ref(v, g, b):
    m = v.mean(-1, keepdims=True)
    var = ((v - m) ** 2).mean(-1, keepdims=True)
    return (v - m) / jnp.sqrt(var + LN_EPS) * g + b


def reference_step(x, h, p):
    """Faithful per-step port of RNNBase.forward using the raw (unfused) params."""
    H = HIDDEN_DIMS[0]
    x = _ln_ref(x, p["ln_in_g"], p["ln_in_b"])
    z = jnp.maximum(_ln_ref(x @ p["pre_w"] + p["pre_b"], p["pre_ln_g"], p["pre_ln_b"]), 0.0)
    gi = z @ p["gru_wih"] + p["gru_bih"]
    gh = h @ p["gru_whh"] + p["gru_bhh"]
    r = jax.nn.sigmoid(gi[:, :H] + gh[:, :H])
    u = jax.nn.sigmoid(gi[:, H:2 * H] + gh[:, H:2 * H])
    n = jnp.tanh(gi[:, 2 * H:] + r * gh[:, 2 * H:])
    h_new = _ln_ref((1.0 - u) * n + u * h, p["gru_ln_g"], p["gru_ln_b"])
    y = jnp.maximum(_ln_ref(h_new @ p["post1_w"] + p["post1_b"],
                            p["post1_ln_g"], p["post1_ln_b"]), 0.0)
    return y @ p["out_w"] + p["out_b"], h_new


# ---------------------------------- main -------------------------------------
if __name__ == "__main__":
    key = jax.random.PRNGKey(0)
    k_param, k_x, k_h = jax.random.split(key, 3)

    raw = init_raw_params(k_param)
    packed = pack_params(raw)

    x_seq = jax.random.normal(k_x, (SEQ, BATCH, INPUT_DIM), jnp.float32)
    # GRULayer.init_hidden -> zeros; use a nonzero hidden to exercise the cell.
    h0 = jax.random.normal(k_h, (BATCH, HIDDEN_DIMS[0]), jnp.float32)

    out_seq, hid_seq = rnnbase_forward(x_seq, h0, packed)
    out_seq = jax.block_until_ready(out_seq)
    hid_seq = jax.block_until_ready(hid_seq)

    # unrolled reference: T sequential applications of the module forward
    h = h0
    outs, hids = [], []
    for t in range(SEQ):
        o, h = reference_step(x_seq[t], h, raw)
        outs.append(o)
        hids.append(h)
    out_ref = jnp.stack(outs)
    hid_ref = jnp.stack(hids)

    np.testing.assert_allclose(np.asarray(out_seq), np.asarray(out_ref),
                               rtol=5e-4, atol=5e-4)
    np.testing.assert_allclose(np.asarray(hid_seq), np.asarray(hid_ref),
                               rtol=5e-4, atol=5e-4)

    print("KERNEL_OK")
</pallas_src>

<mosaic_0001>
module attributes {stable_mosaic.version = 11 : i64} {
  func.func @rnnbase_kernel(%arg0: i32, %arg1: memref<64x16xf32, #tpu.memory_space<vmem>>, %arg2: memref<8x32xf32, #tpu.memory_space<vmem>>, %arg3: memref<16x32xf32, #tpu.memory_space<vmem>>, %arg4: memref<32x128xf32, #tpu.memory_space<vmem>>, %arg5: memref<32x128xf32, #tpu.memory_space<vmem>>, %arg6: memref<32x32xf32, #tpu.memory_space<vmem>>, %arg7: memref<32x128xf32, #tpu.memory_space<vmem>>, %arg8: memref<16x128xf32, #tpu.memory_space<vmem>>, %arg9: memref<64x128xf32, #tpu.memory_space<vmem>>, %arg10: memref<64x128xf32, #tpu.memory_space<vmem>>, %arg11: memref<64x32xf32, #tpu.memory_space<vmem>>) attributes {dimension_semantics = [#tpu.dimension_semantics<arbitrary>], iteration_bounds = array<i64: 1>, scalar_prefetch = 0 : i64, scratch_operands = 2 : i64, tpu.core_type = #tpu.core_type<tc>, window_params = [{pipeline_mode = #tpu.pipeline_mode<synchronous>, transform_indices = @transform_0, window_bounds = array<i64: 64, 16>}, {pipeline_mode = #tpu.pipeline_mode<synchronous>, transform_indices = @transform_1, window_bounds = array<i64: 8, 32>}, {pipeline_mode = #tpu.pipeline_mode<synchronous>, transform_indices = @transform_2, window_bounds = array<i64: 16, 32>}, {pipeline_mode = #tpu.pipeline_mode<synchronous>, transform_indices = @transform_3, window_bounds = array<i64: 32, 128>}, {pipeline_mode = #tpu.pipeline_mode<synchronous>, transform_indices = @transform_4, window_bounds = array<i64: 32, 128>}, {pipeline_mode = #tpu.pipeline_mode<synchronous>, transform_indices = @transform_5, window_bounds = array<i64: 32, 32>}, {pipeline_mode = #tpu.pipeline_mode<synchronous>, transform_indices = @transform_6, window_bounds = array<i64: 32, 128>}, {pipeline_mode = #tpu.pipeline_mode<synchronous>, transform_indices = @transform_7, window_bounds = array<i64: 16, 128>}, {pipeline_mode = #tpu.pipeline_mode<synchronous>, transform_indices = @transform_8, window_bounds = array<i64: 64, 128>}]} {
    %c0 = arith.constant 0 : index
    %c0_0 = arith.constant 0 : index
    %0 = vector.load %arg1[%c0, %c0_0] : memref<64x16xf32, #tpu.memory_space<vmem>>, vector<64x16xf32>
    %cst = arith.constant dense<0.000000e+00> : vector<64xf32>
    %1 = vector.multi_reduction <add>, %0, %cst [1] : vector<64x16xf32> to vector<64xf32>
    %2 = vector.shape_cast %1 : vector<64xf32> to vector<64x1xf32>
    %cst_1 = arith.constant 1.600000e+01 : f32
    %3 = vector.broadcast %cst_1 : f32 to vector<64x1xf32>
    %4 = arith.divf %2, %3 : vector<64x1xf32>
    %5 = vector.broadcast %4 : vector<64x1xf32> to vector<64x16xf32>
    %6 = arith.subf %0, %5 : vector<64x16xf32>
    %7 = arith.mulf %6, %6 : vector<64x16xf32>
    %cst_2 = arith.constant dense<0.000000e+00> : vector<64xf32>
    %8 = vector.multi_reduction <add>, %7, %cst_2 [1] : vector<64x16xf32> to vector<64xf32>
    %9 = vector.shape_cast %8 : vector<64xf32> to vector<64x1xf32>
    %cst_3 = arith.constant 1.600000e+01 : f32
    %10 = vector.broadcast %cst_3 : f32 to vector<64x1xf32>
    %11 = arith.divf %9, %10 : vector<64x1xf32>
    %cst_4 = arith.constant 9.99999974E-6 : f32
    %12 = vector.broadcast %cst_4 : f32 to vector<64x1xf32>
    %13 = arith.addf %11, %12 : vector<64x1xf32>
    %14 = math.rsqrt %13 : vector<64x1xf32>
    %15 = vector.broadcast %14 : vector<64x1xf32> to vector<64x16xf32>
    %16 = arith.mulf %6, %15 : vector<64x16xf32>
    %c0_5 = arith.constant 0 : index
    %c0_6 = arith.constant 0 : index
    %17 = vector.load %arg3[%c0_5, %c0_6] : memref<16x32xf32, #tpu.memory_space<vmem>>, vector<16x32xf32>
    %cst_7 = arith.constant dense<0.000000e+00> : vector<64x32xf32>
    %18 = tpu.matmul %16, %17, %cst_7 {dimension_numbers = #tpu.dot_dimension_numbers<[1], [0], [0], [1], [0, 0, 1, 1], [], []>} : vector<64x16xf32>, vector<16x32xf32>, vector<64x32xf32> -> vector<64x32xf32>
    %c0_8 = arith.constant 0 : index
    %c0_9 = arith.constant 0 : index
    %19 = vector.load %arg8[%c0_8, %c0_9] : memref<16x128xf32, #tpu.memory_space<vmem>>, vector<1x32xf32>
    %20 = vector.broadcast %19 : vector<1x32xf32> to vector<64x32xf32>
    %21 = arith.addf %18, %20 : vector<64x32xf32>
    %c1 = arith.constant 1 : index
    %c0_10 = arith.constant 0 : index
    %22 = vector.load %arg8[%c1, %c0_10] : memref<16x128xf32, #tpu.memory_space<vmem>>, vector<1x32xf32>
    %c2 = arith.constant 2 : index
    %c0_11 = arith.constant 0 : index
    %23 = vector.load %arg8[%c2, %c0_11] : memref<16x128xf32, #tpu.memory_space<vmem>>, vector<1x32xf32>
    %cst_12 = arith.constant dense<0.000000e+00> : vector<64xf32>
    %24 = vector.multi_reduction <add>, %21, %cst_12 [1] : vector<64x32xf32> to vector<64xf32>
    %25 = vector.shape_cast %24 : vector<64xf32> to vector<64x1xf32>
    %cst_13 = arith.constant 3.200000e+01 : f32
    %26 = vector.broadcast %cst_13 : f32 to vector<64x1xf32>
    %27 = arith.divf %25, %26 : vector<64x1xf32>
    %28 = vector.broadcast %27 : vector<64x1xf32> to vector<64x32xf32>
    %29 = arith.subf %21, %28 : vector<64x32xf32>
    %30 = arith.mulf %29, %29 : vector<64x32xf32>
    %cst_14 = arith.constant dense<0.000000e+00> : vector<64xf32>
    %31 = vector.multi_reduction <add>, %30, %cst_14 [1] : vector<64x32xf32> to vector<64xf32>
    %32 = vector.shape_cast %31 : vector<64xf32> to vector<64x1xf32>
    %cst_15 = arith.constant 3.200000e+01 : f32
    %33 = vector.broadcast %cst_15 : f32 to vector<64x1xf32>
    %34 = arith.divf %32, %33 : vector<64x1xf32>
    %cst_16 = arith.constant 9.99999974E-6 : f32
    %35 = vector.broadcast %cst_16 : f32 to vector<64x1xf32>
    %36 = arith.addf %34, %35 : vector<64x1xf32>
    %37 = math.rsqrt %36 : vector<64x1xf32>
    %38 = vector.broadcast %37 : vector<64x1xf32> to vector<64x32xf32>
    %39 = arith.mulf %29, %38 : vector<64x32xf32>
    %40 = vector.broadcast %22 : vector<1x32xf32> to vector<64x32xf32>
    %41 = arith.mulf %39, %40 : vector<64x32xf32>
    %42 = vector.broadcast %23 : vector<1x32xf32> to vector<64x32xf32>
    %43 = arith.addf %41, %42 : vector<64x32xf32>
    %cst_17 = arith.constant 0.000000e+00 : f32
    %44 = vector.broadcast %cst_17 : f32 to vector<64x32xf32>
    %45 = arith.maximumf %43, %44 : vector<64x32xf32>
    %c0_18 = arith.constant 0 : index
    %c0_19 = arith.constant 0 : index
    %46 = vector.load %arg4[%c0_18, %c0_19] : memref<32x128xf32, #tpu.memory_space<vmem>>, vector<32x128xf32>
    %cst_20 = arith.constant dense<0.000000e+00> : vector<64x128xf32>
    %47 = tpu.matmul %45, %46, %cst_20 {dimension_numbers = #tpu.dot_dimension_numbers<[1], [0], [0], [1], [0, 0, 1, 1], [], []>} : vector<64x32xf32>, vector<32x128xf32>, vector<64x128xf32> -> vector<64x128xf32>
    %c3 = arith.constant 3 : index
    %c0_21 = arith.constant 0 : index
    %48 = vector.load %arg8[%c3, %c0_21] : memref<16x128xf32, #tpu.memory_space<vmem>>, vector<1x128xf32>
    %49 = vector.broadcast %48 : vector<1x128xf32> to vector<64x128xf32>
    %50 = arith.addf %47, %49 : vector<64x128xf32>
    %c0_22 = arith.constant 0 : index
    %c0_23 = arith.constant 0 : index
    %51 = vector.load %arg10[%c0_22, %c0_23] : memref<64x128xf32, #tpu.memory_space<vmem>>, vector<64x128xf32>
    tpu.vector_store %arg10[%c0_22, %c0_23], %50 {strides = array<i32>} : memref<64x128xf32, #tpu.memory_space<vmem>>, vector<64x128xf32>,
    %c0_24 = arith.constant 0 : index
    %c0_25 = arith.constant 0 : index
    %52 = vector.load %arg5[%c0_24, %c0_25] : memref<32x128xf32, #tpu.memory_space<vmem>>, vector<32x128xf32>
    %c4 = arith.constant 4 : index
    %c0_26 = arith.constant 0 : index
    %53 = vector.load %arg8[%c4, %c0_26] : memref<16x128xf32, #tpu.memory_space<vmem>>, vector<1x128xf32>
    %54 = vector.shape_cast %53 : vector<1x128xf32> to vector<1x128xf32>
    %55 = vector.broadcast %54 : vector<1x128xf32> to vector<8x128xf32>
    %c5 = arith.constant 5 : index
    %c0_27 = arith.constant 0 : index
    %56 = vector.load %arg8[%c5, %c0_27] : memref<16x128xf32, #tpu.memory_space<vmem>>, vector<1x32xf32>
    %57 = vector.shape_cast %56 : vector<1x32xf32> to vector<1x32xf32>
    %58 = vector.broadcast %57 : vector<1x32xf32> to vector<8x32xf32>
    %c6 = arith.constant 6 : index
    %c0_28 = arith.constant 0 : index
    %59 = vector.load %arg8[%c6, %c0_28] : memref<16x128xf32, #tpu.memory_space<vmem>>, vector<1x32xf32>
    %60 = vector.shape_cast %59 : vector<1x32xf32> to vector<1x32xf32>
    %61 = vector.broadcast %60 : vector<1x32xf32> to vector<8x32xf32>
    %c0_29 = arith.constant 0 : index
    %c0_30 = arith.constant 0 : index
    %62 = vector.load %arg2[%c0_29, %c0_30] : memref<8x32xf32, #tpu.memory_space<vmem>>, vector<8x32xf32>
    %c0_i32 = arith.constant 0 : i32
    %c8_i32 = arith.constant 8 : i32
    %63 = arith.muli %c0_i32, %c8_i32 : i32
    %64 = tpu.assume_multiple %63, 8 : i32
    %65 = arith.index_cast %64 : i32 to index
    %c0_31 = arith.constant 0 : index
    %66 = vector.load %arg10[%65, %c0_31] : memref<64x128xf32, #tpu.memory_space<vmem>>, vector<8x128xf32>
    %cst_32 = arith.constant dense<0.000000e+00> : vector<8x128xf32>
    %67 = tpu.matmul %62, %52, %cst_32 {dimension_numbers = #tpu.dot_dimension_numbers<[1], [0], [0], [1], [0, 0, 1, 1], [], []>} : vector<8x32xf32>, vector<32x128xf32>, vector<8x128xf32> -> vector<8x128xf32>
    %68 = arith.addf %67, %55 : vector<8x128xf32>
    %69 = arith.addf %66, %68 : vector<8x128xf32>
    %70 = vector.extract_strided_slice %69 {offsets = [0, 0], sizes = [8, 32], strides = [1, 1]} : vector<8x128xf32> to vector<8x32xf32>
    %71 = arith.negf %70 : vector<8x32xf32>
    %72 = math.exp %71 : vector<8x32xf32>
    %cst_33 = arith.constant 1.000000e+00 : f32
    %73 = vector.broadcast %cst_33 : f32 to vector<8x32xf32>
    %74 = arith.addf %73, %72 : vector<8x32xf32>
    %75 = arith.divf %73, %74 : vector<8x32xf32>
    %76 = vector.extract_strided_slice %69 {offsets = [0, 32], sizes = [8, 32], strides = [1, 1]} : vector<8x128xf32> to vector<8x32xf32>
    %77 = arith.negf %76 : vector<8x32xf32>
    %78 = math.exp %77 : vector<8x32xf32>
    %cst_34 = arith.constant 1.000000e+00 : f32
    %79 = vector.broadcast %cst_34 : f32 to vector<8x32xf32>
    %80 = arith.addf %79, %78 : vector<8x32xf32>
    %81 = arith.divf %79, %80 : vector<8x32xf32>
    %82 = vector.extract_strided_slice %66 {offsets = [0, 64], sizes = [8, 32], strides = [1, 1]} : vector<8x128xf32> to vector<8x32xf32>
    %83 = vector.extract_strided_slice %68 {offsets = [0, 64], sizes = [8, 32], strides = [1, 1]} : vector<8x128xf32> to vector<8x32xf32>
    %84 = arith.mulf %75, %83 : vector<8x32xf32>
    %85 = arith.addf %82, %84 : vector<8x32xf32>
    %86 = math.tanh %85 : vector<8x32xf32>
    %cst_35 = arith.constant 1.000000e+00 : f32
    %87 = vector.broadcast %cst_35 : f32 to vector<8x32xf32>
    %88 = arith.subf %87, %81 : vector<8x32xf32>
    %89 = arith.mulf %88, %86 : vector<8x32xf32>
    %90 = arith.mulf %81, %62 : vector<8x32xf32>
    %91 = arith.addf %89, %90 : vector<8x32xf32>
    %cst_36 = arith.constant dense<0.000000e+00> : vector<8xf32>
    %92 = vector.multi_reduction <add>, %91, %cst_36 [1] : vector<8x32xf32> to vector<8xf32>
    %93 = vector.shape_cast %92 : vector<8xf32> to vector<8x1xf32>
    %cst_37 = arith.constant 3.200000e+01 : f32
    %94 = vector.broadcast %cst_37 : f32 to vector<8x1xf32>
    %95 = arith.divf %93, %94 : vector<8x1xf32>
    %96 = vector.broadcast %95 : vector<8x1xf32> to vector<8x32xf32>
    %97 = arith.subf %91, %96 : vector<8x32xf32>
    %98 = arith.mulf %97, %97 : vector<8x32xf32>
    %cst_38 = arith.constant dense<0.000000e+00> : vector<8xf32>
    %99 = vector.multi_reduction <add>, %98, %cst_38 [1] : vector<8x32xf32> to vector<8xf32>
    %100 = vector.shape_cast %99 : vector<8xf32> to vector<8x1xf32>
    %cst_39 = arith.constant 3.200000e+01 : f32
    %101 = vector.broadcast %cst_39 : f32 to vector<8x1xf32>
    %102 = arith.divf %100, %101 : vector<8x1xf32>
    %cst_40 = arith.constant 9.99999974E-6 : f32
    %103 = vector.broadcast %cst_40 : f32 to vector<8x1xf32>
    %104 = arith.addf %102, %103 : vector<8x1xf32>
    %105 = math.rsqrt %104 : vector<8x1xf32>
    %106 = vector.broadcast %105 : vector<8x1xf32> to vector<8x32xf32>
    %107 = arith.mulf %97, %106 : vector<8x32xf32>
    %108 = arith.mulf %107, %58 : vector<8x32xf32>
    %109 = arith.addf %108, %61 : vector<8x32xf32>
    %110 = arith.index_cast %64 : i32 to index
    %c0_41 = arith.constant 0 : index
    %111 = vector.load %arg11[%110, %c0_41] : memref<64x32xf32, #tpu.memory_space<vmem>>, vector<8x32xf32>
    tpu.vector_store %arg11[%110, %c0_41], %109 {strides = array<i32>} : memref<64x32xf32, #tpu.memory_space<vmem>>, vector<8x32xf32>,
    %c1_i32 = arith.constant 1 : i32
    %c8_i32_42 = arith.constant 8 : i32
    %112 = arith.muli %c1_i32, %c8_i32_42 : i32
    %113 = tpu.assume_multiple %112, 8 : i32
    %114 = arith.index_cast %113 : i32 to index
    %c0_43 = arith.constant 0 : index
    %115 = vector.load %arg10[%114, %c0_43] : memref<64x128xf32, #tpu.memory_space<vmem>>, vector<8x128xf32>
    %cst_44 = arith.constant dense<0.000000e+00> : vector<8x128xf32>
    %116 = tpu.matmul %109, %52, %cst_44 {dimension_numbers = #tpu.dot_dimension_numbers<[1], [0], [0], [1], [0, 0, 1, 1], [], []>} : vector<8x32xf32>, vector<32x128xf32>, vector<8x128xf32> -> vector<8x128xf32>
    %117 = arith.addf %116, %55 : vector<8x128xf32>
    %118 = arith.addf %115, %117 : vector<8x128xf32>
    %119 = vector.extract_strided_slice %118 {offsets = [0, 0], sizes = [8, 32], strides = [1, 1]} : vector<8x128xf32> to vector<8x32xf32>
    %120 = arith.negf %119 : vector<8x32xf32>
    %121 = math.exp %120 : vector<8x32xf32>
    %cst_45 = arith.constant 1.000000e+00 : f32
    %122 = vector.broadcast %cst_45 : f32 to vector<8x32xf32>
    %123 = arith.addf %122, %121 : vector<8x32xf32>
    %124 = arith.divf %122, %123 : vector<8x32xf32>
    %125 = vector.extract_strided_slice %118 {offsets = [0, 32], sizes = [8, 32], strides = [1, 1]} : vector<8x128xf32> to vector<8x32xf32>
    %126 = arith.negf %125 : vector<8x32xf32>
    %127 = math.exp %126 : vector<8x32xf32>
    %cst_46 = arith.constant 1.000000e+00 : f32
    %128 = vector.broadcast %cst_46 : f32 to vector<8x32xf32>
    %129 = arith.addf %128, %127 : vector<8x32xf32>
    %130 = arith.divf %128, %129 : vector<8x32xf32>
    %131 = vector.extract_strided_slice %115 {offsets = [0, 64], sizes = [8, 32], strides = [1, 1]} : vector<8x128xf32> to vector<8x32xf32>
    %132 = vector.extract_strided_slice %117 {offsets = [0, 64], sizes = [8, 32], strides = [1, 1]} : vector<8x128xf32> to vector<8x32xf32>
    %133 = arith.mulf %124, %132 : vector<8x32xf32>
    %134 = arith.addf %131, %133 : vector<8x32xf32>
    %135 = math.tanh %134 : vector<8x32xf32>
    %cst_47 = arith.constant 1.000000e+00 : f32
    %136 = vector.broadcast %cst_47 : f32 to vector<8x32xf32>
    %137 = arith.subf %136, %130 : vector<8x32xf32>
    %138 = arith.mulf %137, %135 : vector<8x32xf32>
    %139 = arith.mulf %130, %109 : vector<8x32xf32>
    %140 = arith.addf %138, %139 : vector<8x32xf32>
    %cst_48 = arith.constant dense<0.000000e+00> : vector<8xf32>
    %141 = vector.multi_reduction <add>, %140, %cst_48 [1] : vector<8x32xf32> to vector<8xf32>
    %142 = vector.shape_cast %141 : vector<8xf32> to vector<8x1xf32>
    %cst_49 = arith.constant 3.200000e+01 : f32
    %143 = vector.broadcast %cst_49 : f32 to vector<8x1xf32>
    %144 = arith.divf %142, %143 : vector<8x1xf32>
    %145 = vector.broadcast %144 : vector<8x1xf32> to vector<8x32xf32>
    %146 = arith.subf %140, %145 : vector<8x32xf32>
    %147 = arith.mulf %146, %146 : vector<8x32xf32>
    %cst_50 = arith.constant dense<0.000000e+00> : vector<8xf32>
    %148 = vector.multi_reduction <add>, %147, %cst_50 [1] : vector<8x32xf32> to vector<8xf32>
    %149 = vector.shape_cast %148 : vector<8xf32> to vector<8x1xf32>
    %cst_51 = arith.constant 3.200000e+01 : f32
    %150 = vector.broadcast %cst_51 : f32 to vector<8x1xf32>
    %151 = arith.divf %149, %150 : vector<8x1xf32>
    %cst_52 = arith.constant 9.99999974E-6 : f32
    %152 = vector.broadcast %cst_52 : f32 to vector<8x1xf32>
    %153 = arith.addf %151, %152 : vector<8x1xf32>
    %154 = math.rsqrt %153 : vector<8x1xf32>
    %155 = vector.broadcast %154 : vector<8x1xf32> to vector<8x32xf32>
    %156 = arith.mulf %146, %155 : vector<8x32xf32>
    %157 = arith.mulf %156, %58 : vector<8x32xf32>
    %158 = arith.addf %157, %61 : vector<8x32xf32>
    %159 = arith.index_cast %113 : i32 to index
    %c0_53 = arith.constant 0 : index
    %160 = vector.load %arg11[%159, %c0_53] : memref<64x32xf32, #tpu.memory_space<vmem>>, vector<8x32xf32>
    tpu.vector_store %arg11[%159, %c0_53], %158 {strides = array<i32>} : memref<64x32xf32, #tpu.memory_space<vmem>>, vector<8x32xf32>,
    %c2_i32 = arith.constant 2 : i32
    %c8_i32_54 = arith.constant 8 : i32
    %161 = arith.muli %c2_i32, %c8_i32_54 : i32
    %162 = tpu.assume_multiple %161, 8 : i32
    %163 = arith.index_cast %162 : i32 to index
    %c0_55 = arith.constant 0 : index
    %164 = vector.load %arg10[%163, %c0_55] : memref<64x128xf32, #tpu.memory_space<vmem>>, vector<8x128xf32>
    %cst_56 = arith.constant dense<0.000000e+00> : vector<8x128xf32>
    %165 = tpu.matmul %158, %52, %cst_56 {dimension_numbers = #tpu.dot_dimension_numbers<[1], [0], [0], [1], [0, 0, 1, 1], [], []>} : vector<8x32xf32>, vector<32x128xf32>, vector<8x128xf32> -> vector<8x128xf32>
    %166 = arith.addf %165, %55 : vector<8x128xf32>
    %167 = arith.addf %164, %166 : vector<8x128xf32>
    %168 = vector.extract_strided_slice %167 {offsets = [0, 0], sizes = [8, 32], strides = [1, 1]} : vector<8x128xf32> to vector<8x32xf32>
    %169 = arith.negf %168 : vector<8x32xf32>
    %170 = math.exp %169 : vector<8x32xf32>
    %cst_57 = arith.constant 1.000000e+00 : f32
    %171 = vector.broadcast %cst_57 : f32 to vector<8x32xf32>
    %172 = arith.addf %171, %170 : vector<8x32xf32>
    %173 = arith.divf %171, %172 : vector<8x32xf32>
    %174 = vector.extract_strided_slice %167 {offsets = [0, 32], sizes = [8, 32], strides = [1, 1]} : vector<8x128xf32> to vector<8x32xf32>
    %175 = arith.negf %174 : vector<8x32xf32>
    %176 = math.exp %175 : vector<8x32xf32>
    %cst_58 = arith.constant 1.000000e+00 : f32
    %177 = vector.broadcast %cst_58 : f32 to vector<8x32xf32>
    %178 = arith.addf %177, %176 : vector<8x32xf32>
    %179 = arith.divf %177, %178 : vector<8x32xf32>
    %180 = vector.extract_strided_slice %164 {offsets = [0, 64], sizes = [8, 32], strides = [1, 1]} : vector<8x128xf32> to vector<8x32xf32>
    %181 = vector.extract_strided_slice %166 {offsets = [0, 64], sizes = [8, 32], strides = [1, 1]} : vector<8x128xf32> to vector<8x32xf32>
    %182 = arith.mulf %173, %181 : vector<8x32xf32>
    %183 = arith.addf %180, %182 : vector<8x32xf32>
    %184 = math.tanh %183 : vector<8x32xf32>
    %cst_59 = arith.constant 1.000000e+00 : f32
    %185 = vector.broadcast %cst_59 : f32 to vector<8x32xf32>
    %186 = arith.subf %185, %179 : vector<8x32xf32>
    %187 = arith.mulf %186, %184 : vector<8x32xf32>
    %188 = arith.mulf %179, %158 : vector<8x32xf32>
    %189 = arith.addf %187, %188 : vector<8x32xf32>
    %cst_60 = arith.constant dense<0.000000e+00> : vector<8xf32>
    %190 = vector.multi_reduction <add>, %189, %cst_60 [1] : vector<8x32xf32> to vector<8xf32>
    %191 = vector.shape_cast %190 : vector<8xf32> to vector<8x1xf32>
    %cst_61 = arith.constant 3.200000e+01 : f32
    %192 = vector.broadcast %cst_61 : f32 to vector<8x1xf32>
    %193 = arith.divf %191, %192 : vector<8x1xf32>
    %194 = vector.broadcast %193 : vector<8x1xf32> to vector<8x32xf32>
    %195 = arith.subf %189, %194 : vector<8x32xf32>
    %196 = arith.mulf %195, %195 : vector<8x32xf32>
    %cst_62 = arith.constant dense<0.000000e+00> : vector<8xf32>
    %197 = vector.multi_reduction <add>, %196, %cst_62 [1] : vector<8x32xf32> to vector<8xf32>
    %198 = vector.shape_cast %197 : vector<8xf32> to vector<8x1xf32>
    %cst_63 = arith.constant 3.200000e+01 : f32
    %199 = vector.broadcast %cst_63 : f32 to vector<8x1xf32>
    %200 = arith.divf %198, %199 : vector<8x1xf32>
    %cst_64 = arith.constant 9.99999974E-6 : f32
    %201 = vector.broadcast %cst_64 : f32 to vector<8x1xf32>
    %202 = arith.addf %200, %201 : vector<8x1xf32>
    %203 = math.rsqrt %202 : vector<8x1xf32>
    %204 = vector.broadcast %203 : vector<8x1xf32> to vector<8x32xf32>
    %205 = arith.mulf %195, %204 : vector<8x32xf32>
    %206 = arith.mulf %205, %58 : vector<8x32xf32>
    %207 = arith.addf %206, %61 : vector<8x32xf32>
    %208 = arith.index_cast %162 : i32 to index
    %c0_65 = arith.constant 0 : index
    %209 = vector.load %arg11[%208, %c0_65] : memref<64x32xf32, #tpu.memory_space<vmem>>, vector<8x32xf32>
    tpu.vector_store %arg11[%208, %c0_65], %207 {strides = array<i32>} : memref<64x32xf32, #tpu.memory_space<vmem>>, vector<8x32xf32>,
    %c3_i32 = arith.constant 3 : i32
    %c8_i32_66 = arith.constant 8 : i32
    %210 = arith.muli %c3_i32, %c8_i32_66 : i32
    %211 = tpu.assume_multiple %210, 8 : i32
    %212 = arith.index_cast %211 : i32 to index
    %c0_67 = arith.constant 0 : index
    %213 = vector.load %arg10[%212, %c0_67] : memref<64x128xf32, #tpu.memory_space<vmem>>, vector<8x128xf32>
    %cst_68 = arith.constant dense<0.000000e+00> : vector<8x128xf32>
    %214 = tpu.matmul %207, %52, %cst_68 {dimension_numbers = #tpu.dot_dimension_numbers<[1], [0], [0], [1], [0, 0, 1, 1], [], []>} : vector<8x32xf32>, vector<32x128xf32>, vector<8x128xf32> -> vector<8x128xf32>
    %215 = arith.addf %214, %55 : vector<8x128xf32>
    %216 = arith.addf %213, %215 : vector<8x128xf32>
    %217 = vector.extract_strided_slice %216 {offsets = [0, 0], sizes = [8, 32], strides = [1, 1]} : vector<8x128xf32> to vector<8x32xf32>
    %218 = arith.negf %217 : vector<8x32xf32>
    %219 = math.exp %218 : vector<8x32xf32>
    %cst_69 = arith.constant 1.000000e+00 : f32
    %220 = vector.broadcast %cst_69 : f32 to vector<8x32xf32>
    %221 = arith.addf %220, %219 : vector<8x32xf32>
    %222 = arith.divf %220, %221 : vector<8x32xf32>
    %223 = vector.extract_strided_slice %216 {offsets = [0, 32], sizes = [8, 32], strides = [1, 1]} : vector<8x128xf32> to vector<8x32xf32>
    %224 = arith.negf %223 : vector<8x32xf32>
    %225 = math.exp %224 : vector<8x32xf32>
    %cst_70 = arith.constant 1.000000e+00 : f32
    %226 = vector.broadcast %cst_70 : f32 to vector<8x32xf32>
    %227 = arith.addf %226, %225 : vector<8x32xf32>
    %228 = arith.divf %226, %227 : vector<8x32xf32>
    %229 = vector.extract_strided_slice %213 {offsets = [0, 64], sizes = [8, 32], strides = [1, 1]} : vector<8x128xf32> to vector<8x32xf32>
    %230 = vector.extract_strided_slice %215 {offsets = [0, 64], sizes = [8, 32], strides = [1, 1]} : vector<8x128xf32> to vector<8x32xf32>
    %231 = arith.mulf %222, %230 : vector<8x32xf32>
    %232 = arith.addf %229, %231 : vector<8x32xf32>
    %233 = math.tanh %232 : vector<8x32xf32>
    %cst_71 = arith.constant 1.000000e+00 : f32
    %234 = vector.broadcast %cst_71 : f32 to vector<8x32xf32>
    %235 = arith.subf %234, %228 : vector<8x32xf32>
    %236 = arith.mulf %235, %233 : vector<8x32xf32>
    %237 = arith.mulf %228, %207 : vector<8x32xf32>
    %238 = arith.addf %236, %237 : vector<8x32xf32>
    %cst_72 = arith.constant dense<0.000000e+00> : vector<8xf32>
    %239 = vector.multi_reduction <add>, %238, %cst_72 [1] : vector<8x32xf32> to vector<8xf32>
    %240 = vector.shape_cast %239 : vector<8xf32> to vector<8x1xf32>
    %cst_73 = arith.constant 3.200000e+01 : f32
    %241 = vector.broadcast %cst_73 : f32 to vector<8x1xf32>
    %242 = arith.divf %240, %241 : vector<8x1xf32>
    %243 = vector.broadcast %242 : vector<8x1xf32> to vector<8x32xf32>
    %244 = arith.subf %238, %243 : vector<8x32xf32>
    %245 = arith.mulf %244, %244 : vector<8x32xf32>
    %cst_74 = arith.constant dense<0.000000e+00> : vector<8xf32>
    %246 = vector.multi_reduction <add>, %245, %cst_74 [1] : vector<8x32xf32> to vector<8xf32>
    %247 = vector.shape_cast %246 : vector<8xf32> to vector<8x1xf32>
    %cst_75 = arith.constant 3.200000e+01 : f32
    %248 = vector.broadcast %cst_75 : f32 to vector<8x1xf32>
    %249 = arith.divf %247, %248 : vector<8x1xf32>
    %cst_76 = arith.constant 9.99999974E-6 : f32
    %250 = vector.broadcast %cst_76 : f32 to vector<8x1xf32>
    %251 = arith.addf %249, %250 : vector<8x1xf32>
    %252 = math.rsqrt %251 : vector<8x1xf32>
    %253 = vector.broadcast %252 : vector<8x1xf32> to vector<8x32xf32>
    %254 = arith.mulf %244, %253 : vector<8x32xf32>
    %255 = arith.mulf %254, %58 : vector<8x32xf32>
    %256 = arith.addf %255, %61 : vector<8x32xf32>
    %257 = arith.index_cast %211 : i32 to index
    %c0_77 = arith.constant 0 : index
    %258 = vector.load %arg11[%257, %c0_77] : memref<64x32xf32, #tpu.memory_space<vmem>>, vector<8x32xf32>
    tpu.vector_store %arg11[%257, %c0_77], %256 {strides = array<i32>} : memref<64x32xf32, #tpu.memory_space<vmem>>, vector<8x32xf32>,
    %c4_i32 = arith.constant 4 : i32
    %c8_i32_78 = arith.constant 8 : i32
    %259 = arith.muli %c4_i32, %c8_i32_78 : i32
    %260 = tpu.assume_multiple %259, 8 : i32
    %261 = arith.index_cast %260 : i32 to index
    %c0_79 = arith.constant 0 : index
    %262 = vector.load %arg10[%261, %c0_79] : memref<64x128xf32, #tpu.memory_space<vmem>>, vector<8x128xf32>
    %cst_80 = arith.constant dense<0.000000e+00> : vector<8x128xf32>
    %263 = tpu.matmul %256, %52, %cst_80 {dimension_numbers = #tpu.dot_dimension_numbers<[1], [0], [0], [1], [0, 0, 1, 1], [], []>} : vector<8x32xf32>, vector<32x128xf32>, vector<8x128xf32> -> vector<8x128xf32>
    %264 = arith.addf %263, %55 : vector<8x128xf32>
    %265 = arith.addf %262, %264 : vector<8x128xf32>
    %266 = vector.extract_strided_slice %265 {offsets = [0, 0], sizes = [8, 32], strides = [1, 1]} : vector<8x128xf32> to vector<8x32xf32>
    %267 = arith.negf %266 : vector<8x32xf32>
    %268 = math.exp %267 : vector<8x32xf32>
    %cst_81 = arith.constant 1.000000e+00 : f32
    %269 = vector.broadcast %cst_81 : f32 to vector<8x32xf32>
    %270 = arith.addf %269, %268 : vector<8x32xf32>
    %271 = arith.divf %269, %270 : vector<8x32xf32>
    %272 = vector.extract_strided_slice %265 {offsets = [0, 32], sizes = [8, 32], strides = [1, 1]} : vector<8x128xf32> to vector<8x32xf32>
    %273 = arith.negf %272 : vector<8x32xf32>
    %274 = math.exp %273 : vector<8x32xf32>
    %cst_82 = arith.constant 1.000000e+00 : f32
    %275 = vector.broadcast %cst_82 : f32 to vector<8x32xf32>
    %276 = arith.addf %275, %274 : vector<8x32xf32>
    %277 = arith.divf %275, %276 : vector<8x32xf32>
    %278 = vector.extract_strided_slice %262 {offsets = [0, 64], sizes = [8, 32], strides = [1, 1]} : vector<8x128xf32> to vector<8x32xf32>
    %279 = vector.extract_strided_slice %264 {offsets = [0, 64], sizes = [8, 32], strides = [1, 1]} : vector<8x128xf32> to vector<8x32xf32>
    %280 = arith.mulf %271, %279 : vector<8x32xf32>
    %281 = arith.addf %278, %280 : vector<8x32xf32>
    %282 = math.tanh %281 : vector<8x32xf32>
    %cst_83 = arith.constant 1.000000e+00 : f32
    %283 = vector.broadcast %cst_83 : f32 to vector<8x32xf32>
    %284 = arith.subf %283, %277 : vector<8x32xf32>
    %285 = arith.mulf %284, %282 : vector<8x32xf32>
    %286 = arith.mulf %277, %256 : vector<8x32xf32>
    %287 = arith.addf %285, %286 : vector<8x32xf32>
    %cst_84 = arith.constant dense<0.000000e+00> : vector<8xf32>
    %288 = vector.multi_reduction <add>, %287, %cst_84 [1] : vector<8x32xf32> to vector<8xf32>
    %289 = vector.shape_cast %288 : vector<8xf32> to vector<8x1xf32>
    %cst_85 = arith.constant 3.200000e+01 : f32
    %290 = vector.broadcast %cst_85 : f32 to vector<8x1xf32>
    %291 = arith.divf %289, %290 : vector<8x1xf32>
    %292 = vector.broadcast %291 : vector<8x1xf32> to vector<8x32xf32>
    %293 = arith.subf %287, %292 : vector<8x32xf32>
    %294 = arith.mulf %293, %293 : vector<8x32xf32>
    %cst_86 = arith.constant dense<0.000000e+00> : vector<8xf32>
    %295 = vector.multi_reduction <add>, %294, %cst_86 [1] : vector<8x32xf32> to vector<8xf32>
    %296 = vector.shape_cast %295 : vector<8xf32> to vector<8x1xf32>
    %cst_87 = arith.constant 3.200000e+01 : f32
    %297 = vector.broadcast %cst_87 : f32 to vector<8x1xf32>
    %298 = arith.divf %296, %297 : vector<8x1xf32>
    %cst_88 = arith.constant 9.99999974E-6 : f32
    %299 = vector.broadcast %cst_88 : f32 to vector<8x1xf32>
    %300 = arith.addf %298, %299 : vector<8x1xf32>
    %301 = math.rsqrt %300 : vector<8x1xf32>
    %302 = vector.broadcast %301 : vector<8x1xf32> to vector<8x32xf32>
    %303 = arith.mulf %293, %302 : vector<8x32xf32>
    %304 = arith.mulf %303, %58 : vector<8x32xf32>
    %305 = arith.addf %304, %61 : vector<8x32xf32>
    %306 = arith.index_cast %260 : i32 to index
    %c0_89 = arith.constant 0 : index
    %307 = vector.load %arg11[%306, %c0_89] : memref<64x32xf32, #tpu.memory_space<vmem>>, vector<8x32xf32>
    tpu.vector_store %arg11[%306, %c0_89], %305 {strides = array<i32>} : memref<64x32xf32, #tpu.memory_space<vmem>>, vector<8x32xf32>,
    %c5_i32 = arith.constant 5 : i32
    %c8_i32_90 = arith.constant 8 : i32
    %308 = arith.muli %c5_i32, %c8_i32_90 : i32
    %309 = tpu.assume_multiple %308, 8 : i32
    %310 = arith.index_cast %309 : i32 to index
    %c0_91 = arith.constant 0 : index
    %311 = vector.load %arg10[%310, %c0_91] : memref<64x128xf32, #tpu.memory_space<vmem>>, vector<8x128xf32>
    %cst_92 = arith.constant dense<0.000000e+00> : vector<8x128xf32>
    %312 = tpu.matmul %305, %52, %cst_92 {dimension_numbers = #tpu.dot_dimension_numbers<[1], [0], [0], [1], [0, 0, 1, 1], [], []>} : vector<8x32xf32>, vector<32x128xf32>, vector<8x128xf32> -> vector<8x128xf32>
    %313 = arith.addf %312, %55 : vector<8x128xf32>
    %314 = arith.addf %311, %313 : vector<8x128xf32>
    %315 = vector.extract_strided_slice %314 {offsets = [0, 0], sizes = [8, 32], strides = [1, 1]} : vector<8x128xf32> to vector<8x32xf32>
    %316 = arith.negf %315 : vector<8x32xf32>
    %317 = math.exp %316 : vector<8x32xf32>
    %cst_93 = arith.constant 1.000000e+00 : f32
    %318 = vector.broadcast %cst_93 : f32 to vector<8x32xf32>
    %319 = arith.addf %318, %317 : vector<8x32xf32>
    %320 = arith.divf %318, %319 : vector<8x32xf32>
    %321 = vector.extract_strided_slice %314 {offsets = [0, 32], sizes = [8, 32], strides = [1, 1]} : vector<8x128xf32> to vector<8x32xf32>
    %322 = arith.negf %321 : vector<8x32xf32>
    %323 = math.exp %322 : vector<8x32xf32>
    %cst_94 = arith.constant 1.000000e+00 : f32
    %324 = vector.broadcast %cst_94 : f32 to vector<8x32xf32>
    %325 = arith.addf %324, %323 : vector<8x32xf32>
    %326 = arith.divf %324, %325 : vector<8x32xf32>
    %327 = vector.extract_strided_slice %311 {offsets = [0, 64], sizes = [8, 32], strides = [1, 1]} : vector<8x128xf32> to vector<8x32xf32>
    %328 = vector.extract_strided_slice %313 {offsets = [0, 64], sizes = [8, 32], strides = [1, 1]} : vector<8x128xf32> to vector<8x32xf32>
    %329 = arith.mulf %320, %328 : vector<8x32xf32>
    %330 = arith.addf %327, %329 : vector<8x32xf32>
    %331 = math.tanh %330 : vector<8x32xf32>
    %cst_95 = arith.constant 1.000000e+00 : f32
    %332 = vector.broadcast %cst_95 : f32 to vector<8x32xf32>
    %333 = arith.subf %332, %326 : vector<8x32xf32>
    %334 = arith.mulf %333, %331 : vector<8x32xf32>
    %335 = arith.mulf %326, %305 : vector<8x32xf32>
    %336 = arith.addf %334, %335 : vector<8x32xf32>
    %cst_96 = arith.constant dense<0.000000e+00> : vector<8xf32>
    %337 = vector.multi_reduction <add>, %336, %cst_96 [1] : vector<8x32xf32> to vector<8xf32>
    %338 = vector.shape_cast %337 : vector<8xf32> to vector<8x1xf32>
    %cst_97 = arith.constant 3.200000e+01 : f32
    %339 = vector.broadcast %cst_97 : f32 to vector<8x1xf32>
    %340 = arith.divf %338, %339 : vector<8x1xf32>
    %341 = vector.broadcast %340 : vector<8x1xf32> to vector<8x32xf32>
    %342 = arith.subf %336, %341 : vector<8x32xf32>
    %343 = arith.mulf %342, %342 : vector<8x32xf32>
    %cst_98 = arith.constant dense<0.000000e+00> : vector<8xf32>
    %344 = vector.multi_reduction <add>, %343, %cst_98 [1] : vector<8x32xf32> to vector<8xf32>
    %345 = vector.shape_cast %344 : vector<8xf32> to vector<8x1xf32>
    %cst_99 = arith.constant 3.200000e+01 : f32
    %346 = vector.broadcast %cst_99 : f32 to vector<8x1xf32>
    %347 = arith.divf %345, %346 : vector<8x1xf32>
    %cst_100 = arith.constant 9.99999974E-6 : f32
    %348 = vector.broadcast %cst_100 : f32 to vector<8x1xf32>
    %349 = arith.addf %347, %348 : vector<8x1xf32>
    %350 = math.rsqrt %349 : vector<8x1xf32>
    %351 = vector.broadcast %350 : vector<8x1xf32> to vector<8x32xf32>
    %352 = arith.mulf %342, %351 : vector<8x32xf32>
    %353 = arith.mulf %352, %58 : vector<8x32xf32>
    %354 = arith.addf %353, %61 : vector<8x32xf32>
    %355 = arith.index_cast %309 : i32 to index
    %c0_101 = arith.constant 0 : index
    %356 = vector.load %arg11[%355, %c0_101] : memref<64x32xf32, #tpu.memory_space<vmem>>, vector<8x32xf32>
    tpu.vector_store %arg11[%355, %c0_101], %354 {strides = array<i32>} : memref<64x32xf32, #tpu.memory_space<vmem>>, vector<8x32xf32>,
    %c6_i32 = arith.constant 6 : i32
    %c8_i32_102 = arith.constant 8 : i32
    %357 = arith.muli %c6_i32, %c8_i32_102 : i32
    %358 = tpu.assume_multiple %357, 8 : i32
    %359 = arith.index_cast %358 : i32 to index
    %c0_103 = arith.constant 0 : index
    %360 = vector.load %arg10[%359, %c0_103] : memref<64x128xf32, #tpu.memory_space<vmem>>, vector<8x128xf32>
    %cst_104 = arith.constant dense<0.000000e+00> : vector<8x128xf32>
    %361 = tpu.matmul %354, %52, %cst_104 {dimension_numbers = #tpu.dot_dimension_numbers<[1], [0], [0], [1], [0, 0, 1, 1], [], []>} : vector<8x32xf32>, vector<32x128xf32>, vector<8x128xf32> -> vector<8x128xf32>
    %362 = arith.addf %361, %55 : vector<8x128xf32>
    %363 = arith.addf %360, %362 : vector<8x128xf32>
    %364 = vector.extract_strided_slice %363 {offsets = [0, 0], sizes = [8, 32], strides = [1, 1]} : vector<8x128xf32> to vector<8x32xf32>
    %365 = arith.negf %364 : vector<8x32xf32>
    %366 = math.exp %365 : vector<8x32xf32>
    %cst_105 = arith.constant 1.000000e+00 : f32
    %367 = vector.broadcast %cst_105 : f32 to vector<8x32xf32>
    %368 = arith.addf %367, %366 : vector<8x32xf32>
    %369 = arith.divf %367, %368 : vector<8x32xf32>
    %370 = vector.extract_strided_slice %363 {offsets = [0, 32], sizes = [8, 32], strides = [1, 1]} : vector<8x128xf32> to vector<8x32xf32>
    %371 = arith.negf %370 : vector<8x32xf32>
    %372 = math.exp %371 : vector<8x32xf32>
    %cst_106 = arith.constant 1.000000e+00 : f32
    %373 = vector.broadcast %cst_106 : f32 to vector<8x32xf32>
    %374 = arith.addf %373, %372 : vector<8x32xf32>
    %375 = arith.divf %373, %374 : vector<8x32xf32>
    %376 = vector.extract_strided_slice %360 {offsets = [0, 64], sizes = [8, 32], strides = [1, 1]} : vector<8x128xf32> to vector<8x32xf32>
    %377 = vector.extract_strided_slice %362 {offsets = [0, 64], sizes = [8, 32], strides = [1, 1]} : vector<8x128xf32> to vector<8x32xf32>
    %378 = arith.mulf %369, %377 : vector<8x32xf32>
    %379 = arith.addf %376, %378 : vector<8x32xf32>
    %380 = math.tanh %379 : vector<8x32xf32>
    %cst_107 = arith.constant 1.000000e+00 : f32
    %381 = vector.broadcast %cst_107 : f32 to vector<8x32xf32>
    %382 = arith.subf %381, %375 : vector<8x32xf32>
    %383 = arith.mulf %382, %380 : vector<8x32xf32>
    %384 = arith.mulf %375, %354 : vector<8x32xf32>
    %385 = arith.addf %383, %384 : vector<8x32xf32>
    %cst_108 = arith.constant dense<0.000000e+00> : vector<8xf32>
    %386 = vector.multi_reduction <add>, %385, %cst_108 [1] : vector<8x32xf32> to vector<8xf32>
    %387 = vector.shape_cast %386 : vector<8xf32> to vector<8x1xf32>
    %cst_109 = arith.constant 3.200000e+01 : f32
    %388 = vector.broadcast %cst_109 : f32 to vector<8x1xf32>
    %389 = arith.divf %387, %388 : vector<8x1xf32>
    %390 = vector.broadcast %389 : vector<8x1xf32> to vector<8x32xf32>
    %391 = arith.subf %385, %390 : vector<8x32xf32>
    %392 = arith.mulf %391, %391 : vector<8x32xf32>
    %cst_110 = arith.constant dense<0.000000e+00> : vector<8xf32>
    %393 = vector.multi_reduction <add>, %392, %cst_110 [1] : vector<8x32xf32> to vector<8xf32>
    %394 = vector.shape_cast %393 : vector<8xf32> to vector<8x1xf32>
    %cst_111 = arith.constant 3.200000e+01 : f32
    %395 = vector.broadcast %cst_111 : f32 to vector<8x1xf32>
    %396 = arith.divf %394, %395 : vector<8x1xf32>
    %cst_112 = arith.constant 9.99999974E-6 : f32
    %397 = vector.broadcast %cst_112 : f32 to vector<8x1xf32>
    %398 = arith.addf %396, %397 : vector<8x1xf32>
    %399 = math.rsqrt %398 : vector<8x1xf32>
    %400 = vector.broadcast %399 : vector<8x1xf32> to vector<8x32xf32>
    %401 = arith.mulf %391, %400 : vector<8x32xf32>
    %402 = arith.mulf %401, %58 : vector<8x32xf32>
    %403 = arith.addf %402, %61 : vector<8x32xf32>
    %404 = arith.index_cast %358 : i32 to index
    %c0_113 = arith.constant 0 : index
    %405 = vector.load %arg11[%404, %c0_113] : memref<64x32xf32, #tpu.memory_space<vmem>>, vector<8x32xf32>
    tpu.vector_store %arg11[%404, %c0_113], %403 {strides = array<i32>} : memref<64x32xf32, #tpu.memory_space<vmem>>, vector<8x32xf32>,
    %c7_i32 = arith.constant 7 : i32
    %c8_i32_114 = arith.constant 8 : i32
    %406 = arith.muli %c7_i32, %c8_i32_114 : i32
    %407 = tpu.assume_multiple %406, 8 : i32
    %408 = arith.index_cast %407 : i32 to index
    %c0_115 = arith.constant 0 : index
    %409 = vector.load %arg10[%408, %c0_115] : memref<64x128xf32, #tpu.memory_space<vmem>>, vector<8x128xf32>
    %cst_116 = arith.constant dense<0.000000e+00> : vector<8x128xf32>
    %410 = tpu.matmul %403, %52, %cst_116 {dimension_numbers = #tpu.dot_dimension_numbers<[1], [0], [0], [1], [0, 0, 1, 1], [], []>} : vector<8x32xf32>, vector<32x128xf32>, vector<8x128xf32> -> vector<8x128xf32>
    %411 = arith.addf %410, %55 : vector<8x128xf32>
    %412 = arith.addf %409, %411 : vector<8x128xf32>
    %413 = vector.extract_strided_slice %412 {offsets = [0, 0], sizes = [8, 32], strides = [1, 1]} : vector<8x128xf32> to vector<8x32xf32>
    %414 = arith.negf %413 : vector<8x32xf32>
    %415 = math.exp %414 : vector<8x32xf32>
    %cst_117 = arith.constant 1.000000e+00 : f32
    %416 = vector.broadcast %cst_117 : f32 to vector<8x32xf32>
    %417 = arith.addf %416, %415 : vector<8x32xf32>
    %418 = arith.divf %416, %417 : vector<8x32xf32>
    %419 = vector.extract_strided_slice %412 {offsets = [0, 32], sizes = [8, 32], strides = [1, 1]} : vector<8x128xf32> to vector<8x32xf32>
    %420 = arith.negf %419 : vector<8x32xf32>
    %421 = math.exp %420 : vector<8x32xf32>
    %cst_118 = arith.constant 1.000000e+00 : f32
    %422 = vector.broadcast %cst_118 : f32 to vector<8x32xf32>
    %423 = arith.addf %422, %421 : vector<8x32xf32>
    %424 = arith.divf %422, %423 : vector<8x32xf32>
    %425 = vector.extract_strided_slice %409 {offsets = [0, 64], sizes = [8, 32], strides = [1, 1]} : vector<8x128xf32> to vector<8x32xf32>
    %426 = vector.extract_strided_slice %411 {offsets = [0, 64], sizes = [8, 32], strides = [1, 1]} : vector<8x128xf32> to vector<8x32xf32>
    %427 = arith.mulf %418, %426 : vector<8x32xf32>
    %428 = arith.addf %425, %427 : vector<8x32xf32>
    %429 = math.tanh %428 : vector<8x32xf32>
    %cst_119 = arith.constant 1.000000e+00 : f32
    %430 = vector.broadcast %cst_119 : f32 to vector<8x32xf32>
    %431 = arith.subf %430, %424 : vector<8x32xf32>
    %432 = arith.mulf %431, %429 : vector<8x32xf32>
    %433 = arith.mulf %424, %403 : vector<8x32xf32>
    %434 = arith.addf %432, %433 : vector<8x32xf32>
    %cst_120 = arith.constant dense<0.000000e+00> : vector<8xf32>
    %435 = vector.multi_reduction <add>, %434, %cst_120 [1] : vector<8x32xf32> to vector<8xf32>
    %436 = vector.shape_cast %435 : vector<8xf32> to vector<8x1xf32>
    %cst_121 = arith.constant 3.200000e+01 : f32
    %437 = vector.broadcast %cst_121 : f32 to vector<8x1xf32>
    %438 = arith.divf %436, %437 : vector<8x1xf32>
    %439 = vector.broadcast %438 : vector<8x1xf32> to vector<8x32xf32>
    %440 = arith.subf %434, %439 : vector<8x32xf32>
    %441 = arith.mulf %440, %440 : vector<8x32xf32>
    %cst_122 = arith.constant dense<0.000000e+00> : vector<8xf32>
    %442 = vector.multi_reduction <add>, %441, %cst_122 [1] : vector<8x32xf32> to vector<8xf32>
    %443 = vector.shape_cast %442 : vector<8xf32> to vector<8x1xf32>
    %cst_123 = arith.constant 3.200000e+01 : f32
    %444 = vector.broadcast %cst_123 : f32 to vector<8x1xf32>
    %445 = arith.divf %443, %444 : vector<8x1xf32>
    %cst_124 = arith.constant 9.99999974E-6 : f32
    %446 = vector.broadcast %cst_124 : f32 to vector<8x1xf32>
    %447 = arith.addf %445, %446 : vector<8x1xf32>
    %448 = math.rsqrt %447 : vector<8x1xf32>
    %449 = vector.broadcast %448 : vector<8x1xf32> to vector<8x32xf32>
    %450 = arith.mulf %440, %449 : vector<8x32xf32>
    %451 = arith.mulf %450, %58 : vector<8x32xf32>
    %452 = arith.addf %451, %61 : vector<8x32xf32>
    %453 = arith.index_cast %407 : i32 to index
    %c0_125 = arith.constant 0 : index
    %454 = vector.load %arg11[%453, %c0_125] : memref<64x32xf32, #tpu.memory_space<vmem>>, vector<8x32xf32>
    tpu.vector_store %arg11[%453, %c0_125], %452 {strides = array<i32>} : memref<64x32xf32, #tpu.memory_space<vmem>>, vector<8x32xf32>,
    %c8_i32_126 = arith.constant 8 : i32
    %c0_127 = arith.constant 0 : index
    %c0_128 = arith.constant 0 : index
    %455 = vector.load %arg11[%c0_127, %c0_128] : memref<64x32xf32, #tpu.memory_space<vmem>>, vector<64x32xf32>
    %c0_129 = arith.constant 0 : index
    %c0_130 = arith.constant 0 : index
    %456 = vector.load %arg6[%c0_129, %c0_130] : memref<32x32xf32, #tpu.memory_space<vmem>>, vector<32x32xf32>
    %cst_131 = arith.constant dense<0.000000e+00> : vector<64x32xf32>
    %457 = tpu.matmul %455, %456, %cst_131 {dimension_numbers = #tpu.dot_dimension_numbers<[1], [0], [0], [1], [0, 0, 1, 1], [], []>} : vector<64x32xf32>, vector<32x32xf32>, vector<64x32xf32> -> vector<64x32xf32>
    %c7 = arith.constant 7 : index
    %c0_132 = arith.constant 0 : index
    %458 = vector.load %arg8[%c7, %c0_132] : memref<16x128xf32, #tpu.memory_space<vmem>>, vector<1x32xf32>
    %459 = vector.broadcast %458 : vector<1x32xf32> to vector<64x32xf32>
    %460 = arith.addf %457, %459 : vector<64x32xf32>
    %c8 = arith.constant 8 : index
    %c0_133 = arith.constant 0 : index
    %461 = vector.load %arg8[%c8, %c0_133] : memref<16x128xf32, #tpu.memory_space<vmem>>, vector<1x32xf32>
    %c9 = arith.constant 9 : index
    %c0_134 = arith.constant 0 : index
    %462 = vector.load %arg8[%c9, %c0_134] : memref<16x128xf32, #tpu.memory_space<vmem>>, vector<1x32xf32>
    %cst_135 = arith.constant dense<0.000000e+00> : vector<64xf32>
    %463 = vector.multi_reduction <add>, %460, %cst_135 [1] : vector<64x32xf32> to vector<64xf32>
    %464 = vector.shape_cast %463 : vector<64xf32> to vector<64x1xf32>
    %cst_136 = arith.constant 3.200000e+01 : f32
    %465 = vector.broadcast %cst_136 : f32 to vector<64x1xf32>
    %466 = arith.divf %464, %465 : vector<64x1xf32>
    %467 = vector.broadcast %466 : vector<64x1xf32> to vector<64x32xf32>
    %468 = arith.subf %460, %467 : vector<64x32xf32>
    %469 = arith.mulf %468, %468 : vector<64x32xf32>
    %cst_137 = arith.constant dense<0.000000e+00> : vector<64xf32>
    %470 = vector.multi_reduction <add>, %469, %cst_137 [1] : vector<64x32xf32> to vector<64xf32>
    %471 = vector.shape_cast %470 : vector<64xf32> to vector<64x1xf32>
    %cst_138 = arith.constant 3.200000e+01 : f32
    %472 = vector.broadcast %cst_138 : f32 to vector<64x1xf32>
    %473 = arith.divf %471, %472 : vector<64x1xf32>
    %cst_139 = arith.constant 9.99999974E-6 : f32
    %474 = vector.broadcast %cst_139 : f32 to vector<64x1xf32>
    %475 = arith.addf %473, %474 : vector<64x1xf32>
    %476 = math.rsqrt %475 : vector<64x1xf32>
    %477 = vector.broadcast %476 : vector<64x1xf32> to vector<64x32xf32>
    %478 = arith.mulf %468, %477 : vector<64x32xf32>
    %479 = vector.broadcast %461 : vector<1x32xf32> to vector<64x32xf32>
    %480 = arith.mulf %478, %479 : vector<64x32xf32>
    %481 = vector.broadcast %462 : vector<1x32xf32> to vector<64x32xf32>
    %482 = arith.addf %480, %481 : vector<64x32xf32>
    %cst_140 = arith.constant 0.000000e+00 : f32
    %483 = vector.broadcast %cst_140 : f32 to vector<64x32xf32>
    %484 = arith.maximumf %482, %483 : vector<64x32xf32>
    %c0_141 = arith.constant 0 : index
    %c0_142 = arith.constant 0 : index
    %485 = vector.load %arg7[%c0_141, %c0_142] : memref<32x128xf32, #tpu.memory_space<vmem>>, vector<32x128xf32>
    %cst_143 = arith.constant dense<0.000000e+00> : vector<64x128xf32>
    %486 = tpu.matmul %484, %485, %cst_143 {dimension_numbers = #tpu.dot_dimension_numbers<[1], [0], [0], [1], [0, 0, 1, 1], [], []>} : vector<64x32xf32>, vector<32x128xf32>, vector<64x128xf32> -> vector<64x128xf32>
    %c10 = arith.constant 10 : index
    %c0_144 = arith.constant 0 : index
    %487 = vector.load %arg8[%c10, %c0_144] : memref<16x128xf32, #tpu.memory_space<vmem>>, vector<1x128xf32>
    %488 = vector.broadcast %487 : vector<1x128xf32> to vector<64x128xf32>
    %489 = arith.addf %486, %488 : vector<64x128xf32>
    %cst_145 = arith.constant 0.000000e+00 : f32
    %490 = vector.broadcast %cst_145 : f32 to vector<64x96xf32>
    %491 = tpu.concatenate %455, %490 in 1 : vector<64x32xf32>, vector<64x96xf32> -> vector<64x128xf32>
    %492 = arith.addf %489, %491 : vector<64x128xf32>
    %c0_146 = arith.constant 0 : index
    %c0_147 = arith.constant 0 : index
    %493 = vector.load %arg9[%c0_146, %c0_147] : memref<64x128xf32, #tpu.memory_space<vmem>>, vector<64x128xf32>
    tpu.vector_store %arg9[%c0_146, %c0_147], %492 {strides = array<i32>} : memref<64x128xf32, #tpu.memory_space<vmem>>, vector<64x128xf32>,
    return
  }
  func.func @transform_0(%arg0: i32) -> (i32, i32) {
    %c0_i32 = arith.constant 0 : i32
    %c0_i32_0 = arith.constant 0 : i32
    %c0_i32_1 = arith.constant 0 : i32
    return %c0_i32, %c0_i32_0 : i32, i32
  }
  func.func @transform_1(%arg0: i32) -> (i32, i32) {
    %c0_i32 = arith.constant 0 : i32
    %c0_i32_0 = arith.constant 0 : i32
    %c0_i32_1 = arith.constant 0 : i32
    return %c0_i32, %c0_i32_0 : i32, i32
  }
  func.func @transform_2(%arg0: i32) -> (i32, i32) {
    %c0_i32 = arith.constant 0 : i32
    %c0_i32_0 = arith.constant 0 : i32
    %c0_i32_1 = arith.constant 0 : i32
    return %c0_i32, %c0_i32_0 : i32, i32
  }
  func.func @transform_3(%arg0: i32) -> (i32, i32) {
    %c0_i32 = arith.constant 0 : i32
    %c0_i32_0 = arith.constant 0 : i32
    %c0_i32_1 = arith.constant 0 : i32
    return %c0_i32, %c0_i32_0 : i32, i32
  }
  func.func @transform_4(%arg0: i32) -> (i32, i32) {
    %c0_i32 = arith.constant 0 : i32
    %c0_i32_0 = arith.constant 0 : i32
    %c0_i32_1 = arith.constant 0 : i32
    return %c0_i32, %c0_i32_0 : i32, i32
  }
  func.func @transform_5(%arg0: i32) -> (i32, i32) {
    %c0_i32 = arith.constant 0 : i32
    %c0_i32_0 = arith.constant 0 : i32
    %c0_i32_1 = arith.constant 0 : i32
    return %c0_i32, %c0_i32_0 : i32, i32
  }
  func.func @transform_6(%arg0: i32) -> (i32, i32) {
    %c0_i32 = arith.constant 0 : i32
    %c0_i32_0 = arith.constant 0 : i32
    %c0_i32_1 = arith.constant 0 : i32
    return %c0_i32, %c0_i32_0 : i32, i32
  }
  func.func @transform_7(%arg0: i32) -> (i32, i32) {
    %c0_i32 = arith.constant 0 : i32
    %c0_i32_0 = arith.constant 0 : i32
    %c0_i32_1 = arith.constant 0 : i32
    return %c0_i32, %c0_i32_0 : i32, i32
  }
  func.func @transform_8(%arg0: i32) -> (i32, i32) {
    %c0_i32 = arith.constant 0 : i32
    %c0_i32_0 = arith.constant 0 : i32
    %c0_i32_1 = arith.constant 0 : i32
    return %c0_i32, %c0_i32_0 : i32, i32
  }
}

</mosaic_0001>

<llo_original>
// kernel: tpu_custom_call.1
$region0: #{tpu_custom_call.1}
  #allocation0 [shape = 'u32[]', space=smem, size = 0x4, offset = 0x4, fixed_abs, tag = 'smem constant byte address 0x4 - core index']
  #allocation1 [shape = 'u32[144,128]{1,0:T(1,128)}', space=vmem, size = 0x12000, scoped, tag = 'internal scratch']
  #allocation2 [shape = 'f32[64,128]{1,0:T(8,128)}', space=vmem, size = 0x8000, scoped, tag = 'scratch operand']
  #allocation3 [shape = 'f32[64,32]{1,0:T(8,128)}', space=vmem, size = 0x8000, scoped, tag = 'scratch operand']
  %s0 = inlined_call_operand.vmem [shape: f32[64,16], index: 0, kind: input, shape index: {}]
  %s1 = inlined_call_operand.hbm [shape: f32[8,32], index: 1, kind: input, shape index: {}]
  %s2 = inlined_call_operand.vmem [shape: f32[16,32], index: 2, kind: input, shape index: {}]
  %s3 = inlined_call_operand.vmem [shape: f32[32,128], index: 3, kind: input, shape index: {}]
  %s4 = inlined_call_operand.vmem [shape: f32[32,128], index: 4, kind: input, shape index: {}]
  %s5 = inlined_call_operand.hbm [shape: f32[32,32], index: 5, kind: input, shape index: {}]
  %s6 = inlined_call_operand.hbm [shape: f32[32,128], index: 6, kind: input, shape index: {}]
  %s7 = inlined_call_operand.hbm [shape: f32[16,128], index: 7, kind: input, shape index: {}]
  %s8 = inlined_call_operand.hbm [shape: f32[64,128], index: 8, kind: output, shape index: {}]
  %s9 = sld [smem:[#allocation0]]
  $region58: #{tpu_custom_call.1} parent=0
    _
  %s11 = ssub.s32 1, %s9
  %s12 = scalar_select 0, %s11, %s9
  $region1: #{tpu_custom_call.1} parent=0
    #allocation4 [shape = 'u8[4096]{0}', space=vmem, size = 0x1000, scoped, tag = 'input window, operand 1, single buffered']
    #allocation5 [shape = 's32[1]{0}', space=sflag, size = 0x4, scoped, tag = 'scoped memory for tpu_custom_call.1']
    #allocation6 [shape = 's32[1]{0}', space=sflag, size = 0x4, scoped, tag = 'scoped memory for tpu_custom_call.1']
    #allocation7 [shape = 'u8[16384]{0}', space=vmem, size = 0x4000, scoped, tag = 'input window, operand 5, single buffered']
    #allocation8 [shape = 's32[1]{0}', space=sflag, size = 0x4, scoped, tag = 'scoped memory for tpu_custom_call.1']
    #allocation9 [shape = 'u8[16384]{0}', space=vmem, size = 0x4000, scoped, tag = 'input window, operand 6, single buffered']
    #allocation10 [shape = 'u8[8192]{0}', space=vmem, size = 0x2000, scoped, tag = 'input window, operand 7, single buffered']
    #allocation11 [shape = 's32[1]{0}', space=sflag, size = 0x4, scoped, tag = 'scoped memory for tpu_custom_call.1']
    #allocation12 [shape = 'u8[32768]{0}', space=vmem, size = 0x8000, scoped, tag = 'output window, operand 0, single buffered']
    %13 = vsyncpa [#allocation5], 0
    %14 = vsyncpa [#allocation8], 0
    %15 = vsyncpa [#allocation11], 0
    %16 = vsyncpa [#allocation6], 0
    // Predicated region
    $region2: #{tpu_custom_call.1} parent=1 // pred_check
      _
    $region3: #{tpu_custom_call.1} parent=1 // pred_check_branch
      %18 = sbr.rel (0) target = $region5
    $region4: #{tpu_custom_call.1} parent=1 // pred_region
      _
    $region5: #{tpu_custom_call.1} parent=1 // pred_fallthru
      _
    // Predicated region
    $region6: #{tpu_custom_call.1} parent=1 // pred_check
      _
    $region7: #{tpu_custom_call.1} parent=1 // pred_check_branch
      %20 = sbr.rel (0) target = $region9
    $region8: #{tpu_custom_call.1} parent=1 // pred_region
      %s22 = ssub.s32 128, 128
      %23 = vsyncadd [#allocation5], %s22
      %s25 = sshll.u32 [#allocation4], 4
      %s26 = int_to_ptr.vmem [resolvable:$true] %s25
      %28 = dma.hbm_to_vmem [thread:$0]  %s1, 128, %s26, [#allocation5]
    $region9: #{tpu_custom_call.1} parent=1 // pred_fallthru
      _
    // Predicated region
    $region10: #{tpu_custom_call.1} parent=1 // pred_check
      _
    $region11: #{tpu_custom_call.1} parent=1 // pred_check_branch
      %30 = sbr.rel (0) target = $region13
    $region12: #{tpu_custom_call.1} parent=1 // pred_region
      _
    $region13: #{tpu_custom_call.1} parent=1 // pred_fallthru
      _
    // Predicated region
    $region14: #{tpu_custom_call.1} parent=1 // pred_check
      _
    $region15: #{tpu_custom_call.1} parent=1 // pred_check_branch
      %32 = sbr.rel (0) target = $region17
    $region16: #{tpu_custom_call.1} parent=1 // pred_region
      _
    $region17: #{tpu_custom_call.1} parent=1 // pred_fallthru
      _
    // Predicated region
    $region18: #{tpu_custom_call.1} parent=1 // pred_check
      _
    $region19: #{tpu_custom_call.1} parent=1 // pred_check_branch
      %34 = sbr.rel (0) target = $region21
    $region20: #{tpu_custom_call.1} parent=1 // pred_region
      _
    $region21: #{tpu_custom_call.1} parent=1 // pred_fallthru
      _
    // Predicated region
    $region22: #{tpu_custom_call.1} parent=1 // pred_check
      _
    $region23: #{tpu_custom_call.1} parent=1 // pred_check_branch
      %36 = sbr.rel (0) target = $region25
    $region24: #{tpu_custom_call.1} parent=1 // pred_region
      %s38 = ssub.s32 512, 512
      %39 = vsyncadd [#allocation8], %s38
      %s40 = sshll.u32 [#allocation7], 4
      %s41 = int_to_ptr.vmem [resolvable:$true] %s40
      %46 = dma.hbm_to_vmem [thread:$0]  %s5, 512, %s41, [#allocation8], 128, 128, 8
    $region25: #{tpu_custom_call.1} parent=1 // pred_fallthru
      _
    // Predicated region
    $region26: #{tpu_custom_call.1} parent=1 // pred_check
      _
    $region27: #{tpu_custom_call.1} parent=1 // pred_check_branch
      %48 = sbr.rel (0) target = $region29
    $region28: #{tpu_custom_call.1} parent=1 // pred_region
      %s50 = ssub.s32 512, 512
      %51 = vsyncadd [#allocation8], %s50
      %s52 = sshll.u32 [#allocation9], 4
      %s53 = int_to_ptr.vmem [resolvable:$true] %s52
      %58 = dma.hbm_to_vmem [thread:$0]  %s6, 512, %s53, [#allocation8], 128, 128, 8
    $region29: #{tpu_custom_call.1} parent=1 // pred_fallthru
      _
    // Predicated region
    $region30: #{tpu_custom_call.1} parent=1 // pred_check
      _
    $region31: #{tpu_custom_call.1} parent=1 // pred_check_branch
      %60 = sbr.rel (0) target = $region33
    $region32: #{tpu_custom_call.1} parent=1 // pred_region
      %s62 = ssub.s32 256, 256
      %63 = vsyncadd [#allocation11], %s62
      %s64 = sshll.u32 [#allocation10], 4
      %s65 = int_to_ptr.vmem [resolvable:$true] %s64
      %70 = dma.hbm_to_vmem [thread:$0]  %s7, 256, %s65, [#allocation11], 128, 128, 8
    $region33: #{tpu_custom_call.1} parent=1 // pred_fallthru
      _
    // Predicated region
    $region34: #{tpu_custom_call.1} parent=1 // pred_check
      _
    $region35: #{tpu_custom_call.1} parent=1 // pred_check_branch
      %72 = sbr.rel (0) target = $region37
    $region36: #{tpu_custom_call.1} parent=1 // pred_region
      %73 = dma.done [#allocation5], 128
    $region37: #{tpu_custom_call.1} parent=1 // pred_fallthru
      _
    // Predicated region
    $region38: #{tpu_custom_call.1} parent=1 // pred_check
      _
    $region39: #{tpu_custom_call.1} parent=1 // pred_check_branch
      %75 = sbr.rel (0) target = $region41
    $region40: #{tpu_custom_call.1} parent=1 // pred_region
      %76 = dma.done [#allocation8], 512
    $region41: #{tpu_custom_call.1} parent=1 // pred_fallthru
      _
    // Predicated region
    $region42: #{tpu_custom_call.1} parent=1 // pred_check
      _
    $region43: #{tpu_custom_call.1} parent=1 // pred_check_branch
      %78 = sbr.rel (0) target = $region45
    $region44: #{tpu_custom_call.1} parent=1 // pred_region
      %79 = dma.done [#allocation8], 512
    $region45: #{tpu_custom_call.1} parent=1 // pred_fallthru
      _
    // Predicated region
    $region46: #{tpu_custom_call.1} parent=1 // pred_check
      _
    $region47: #{tpu_custom_call.1} parent=1 // pred_check_branch
      %81 = sbr.rel (0) target = $region49
    $region48: #{tpu_custom_call.1} parent=1 // pred_region
      %82 = dma.done [#allocation11], 256
    $region49: #{tpu_custom_call.1} parent=1 // pred_fallthru
      _
    %v83 = vld [vmem:[%s0] sm:$0xff]
    %v84 = vld [vmem:[%s0 + $0x8] sm:$0xff]
    %v85 = vld [vmem:[%s0 + $0x10] sm:$0xff]
    %v86 = vld [vmem:[%s0 + $0x18] sm:$0xff]
    %v87 = vld [vmem:[%s0 + $0x20] sm:$0xff]
    %v88 = vld [vmem:[%s0 + $0x28] sm:$0xff]
    %v89 = vld [vmem:[%s0 + $0x30] sm:$0xff]
    %v90 = vld [vmem:[%s0 + $0x38] sm:$0xff]
    %vm91 = vcmask 130048
    %v92 = vsel %vm91, %v83, 0.0
    %93 = vadd.xlane.f32.xlu0 %v92
    %v94 = vpop.xlane.xlu0 %93
    %v95 = vsel %vm91, %v84, 0.0
    %96 = vadd.xlane.f32.xlu0 %v95
    %v97 = vpop.xlane.xlu0 %96
    %v98 = vsel %vm91, %v85, 0.0
    %99 = vadd.xlane.f32.xlu0 %v98
    %v100 = vpop.xlane.xlu0 %99
    %v101 = vsel %vm91, %v86, 0.0
    %102 = vadd.xlane.f32.xlu0 %v101
    %v103 = vpop.xlane.xlu0 %102
    %v104 = vsel %vm91, %v87, 0.0
    %105 = vadd.xlane.f32.xlu0 %v104
    %v106 = vpop.xlane.xlu0 %105
    %v107 = vsel %vm91, %v88, 0.0
    %108 = vadd.xlane.f32.xlu0 %v107
    %v109 = vpop.xlane.xlu0 %108
    %v110 = vsel %vm91, %v89, 0.0
    %111 = vadd.xlane.f32.xlu0 %v110
    %v112 = vpop.xlane.xlu0 %111
    %v113 = vsel %vm91, %v90, 0.0
    %114 = vadd.xlane.f32.xlu0 %v113
    %v115 = vpop.xlane.xlu0 %114
    %v116 = vrcp.pop 16.0
    %v117 = vmul.f32 %v94, %v116
    %v118 = vmul.f32 %v97, %v116
    %v119 = vmul.f32 %v100, %v116
    %v120 = vmul.f32 %v103, %v116
    %v121 = vmul.f32 %v106, %v116
    %v122 = vmul.f32 %v109, %v116
    %v123 = vmul.f32 %v112, %v116
    %v124 = vmul.f32 %v115, %v116
    %v125 = vsub.f32 %v83, %v117
    %v126 = vsub.f32 %v84, %v118
    %v127 = vsub.f32 %v85, %v119
    %v128 = vsub.f32 %v86, %v120
    %v129 = vsub.f32 %v87, %v121
    %v130 = vsub.f32 %v88, %v122
    %v131 = vsub.f32 %v89, %v123
    %v132 = vsub.f32 %v90, %v124
    %v133 = vmul.f32 %v125, %v125
    %v134 = vmul.f32 %v126, %v126
    %v135 = vmul.f32 %v127, %v127
    %v136 = vmul.f32 %v128, %v128
    %v137 = vmul.f32 %v129, %v129
    %v138 = vmul.f32 %v130, %v130
    %v139 = vmul.f32 %v131, %v131
    %v140 = vmul.f32 %v132, %v132
    %v141 = vsel %vm91, %v133, 0.0
    %142 = vadd.xlane.f32.xlu0 %v141
    %v143 = vpop.xlane.xlu0 %142
    %v144 = vsel %vm91, %v134, 0.0
    %145 = vadd.xlane.f32.xlu0 %v144
    %v146 = vpop.xlane.xlu0 %145
    %v147 = vsel %vm91, %v135, 0.0
    %148 = vadd.xlane.f32.xlu0 %v147
    %v149 = vpop.xlane.xlu0 %148
    %v150 = vsel %vm91, %v136, 0.0
    %151 = vadd.xlane.f32.xlu0 %v150
    %v152 = vpop.xlane.xlu0 %151
    %v153 = vsel %vm91, %v137, 0.0
    %154 = vadd.xlane.f32.xlu0 %v153
    %v155 = vpop.xlane.xlu0 %154
    %v156 = vsel %vm91, %v138, 0.0
    %157 = vadd.xlane.f32.xlu0 %v156
    %v158 = vpop.xlane.xlu0 %157
    %v159 = vsel %vm91, %v139, 0.0
    %160 = vadd.xlane.f32.xlu0 %v159
    %v161 = vpop.xlane.xlu0 %160
    %v162 = vsel %vm91, %v140, 0.0
    %163 = vadd.xlane.f32.xlu0 %v162
    %v164 = vpop.xlane.xlu0 %163
    %v165 = vmul.f32 %v143, %v116
    %v166 = vmul.f32 %v146, %v116
    %v167 = vmul.f32 %v149, %v116
    %v168 = vmul.f32 %v152, %v116
    %v169 = vmul.f32 %v155, %v116
    %v170 = vmul.f32 %v158, %v116
    %v171 = vmul.f32 %v161, %v116
    %v172 = vmul.f32 %v164, %v116
    %v173 = vadd.f32 %v165, 1e-05
    %v174 = vadd.f32 %v166, 1e-05
    %v175 = vadd.f32 %v167, 1e-05
    %v176 = vadd.f32 %v168, 1e-05
    %v177 = vadd.f32 %v169, 1e-05
    %v178 = vadd.f32 %v170, 1e-05
    %v179 = vadd.f32 %v171, 1e-05
    %v180 = vadd.f32 %v172, 1e-05
    %v181 = vrsqrt.pop %v173
    %v182 = vrsqrt.pop %v174
    %v183 = vrsqrt.pop %v175
    %v184 = vrsqrt.pop %v176
    %v185 = vrsqrt.pop %v177
    %v186 = vrsqrt.pop %v178
    %v187 = vrsqrt.pop %v179
    %v188 = vrsqrt.pop %v180
    %v189 = vmul.f32 %v125, %v181
    %v190 = vmul.f32 %v126, %v182
    %v191 = vmul.f32 %v127, %v183
    %v192 = vmul.f32 %v128, %v184
    %v193 = vmul.f32 %v129, %v185
    %v194 = vmul.f32 %v130, %v186
    %v195 = vmul.f32 %v131, %v187
    %v196 = vmul.f32 %v132, %v188
    %v197 = vld [vmem:[%s2] sm:$0xff]
    %v198 = vld [vmem:[%s2 + $0x8] sm:$0xff]
    %v199 = vld [vmem:[#allocation10] sm:$0x1]
    %v200 = vlaneseq
    %v201 = vshrl.u32 %v200, 7
    %v202 = vsub.s32 0, %v201
    %v203 = vrot.slane %v199, %v202
    %v205 = vsel %vm91, %v189, 0
    %v208 = vsel %vm91, %v190, 0
    %v211 = vsel %vm91, %v191, 0
    %v214 = vsel %vm91, %v192, 0
    %v217 = vsel %vm91, %v193, 0
    %v220 = vsel %vm91, %v194, 0
    %v223 = vsel %vm91, %v195, 0
    %v226 = vsel %vm91, %v196, 0
    %228 = vmatprep.subr.mxu0 0.0
    %229 = vmatpush1.msra.mxu0 0.0
    %230 = vmatprep.subr.mxu0 0.0
    %231 = vmatpush1.msra.mxu0 0.0
    %232 = vmatprep.subr.mxu0 0.0
    %233 = vmatpush1.msra.mxu0 0.0
    %234 = vmatprep.subr.mxu0 0.0
    %235 = vmatpush1.msra.mxu0 0.0
    %236 = vmatprep.subr.mxu0 0.0
    %237 = vmatpush1.msra.mxu0 0.0
    %238 = vmatprep.subr.mxu0 0.0
    %239 = vmatpush1.msra.mxu0 0.0
    %240 = vmatprep.subr.mxu0 0.0
    %241 = vmatpush1.msra.mxu0 0.0
    %242 = vmatprep.subr.mxu0 0.0
    %243 = vmatpush1.msra.mxu0 0.0
    %244 = vmatprep.subr.mxu0 0.0
    %245 = vmatpush1.msra.mxu0 0.0
    %246 = vmatprep.subr.mxu0 0.0
    %247 = vmatpush1.msra.mxu0 0.0
    %248 = vmatprep.subr.mxu0 0.0
    %249 = vmatpush1.msra.mxu0 0.0
    %250 = vmatprep.subr.mxu0 0.0
    %251 = vmatpush1.msra.mxu0 0.0
    %252 = vmatprep.subr.mxu0 0.0
    %253 = vmatpush1.msra.mxu0 0.0
    %254 = vmatprep.subr.mxu0 0.0
    %255 = vmatpush1.msra.mxu0 0.0
    %256 = vmatprep.subr.mxu0 0.0
    %257 = vmatpush1.msra.mxu0 %v198
    %258 = vmatprep.subr.mxu0 0.0
    %259 = vmatpush1.msra.mxu0 %v197
    %260 = vmatprep.subr.mxu0 0.0
    %261 = vmatpush2.msra.mxu0 0.0
    %262 = vmatprep.subr.mxu0 0.0
    %263 = vmatpush2.msra.mxu0 0.0
    %264 = vmatprep.subr.mxu0 0.0
    %265 = vmatpush2.msra.mxu0 0.0
    %266 = vmatprep.subr.mxu0 0.0
    %267 = vmatpush2.msra.mxu0 0.0
    %268 = vmatprep.subr.mxu0 0.0
    %269 = vmatpush2.msra.mxu0 0.0
    %270 = vmatprep.subr.mxu0 0.0
    %271 = vmatpush2.msra.mxu0 0.0
    %272 = vmatprep.subr.mxu0 0.0
    %273 = vmatpush2.msra.mxu0 0.0
    %274 = vmatprep.subr.mxu0 0.0
    %275 = vmatpush2.msra.mxu0 0.0
    %276 = vmatprep.subr.mxu0 0.0
    %277 = vmatpush2.msra.mxu0 0.0
    %278 = vmatprep.subr.mxu0 0.0
    %279 = vmatpush2.msra.mxu0 0.0
    %280 = vmatprep.subr.mxu0 0.0
    %281 = vmatpush2.msra.mxu0 0.0
    %282 = vmatprep.subr.mxu0 0.0
    %283 = vmatpush2.msra.mxu0 0.0
    %284 = vmatprep.subr.mxu0 0.0
    %285 = vmatpush2.msra.mxu0 0.0
    %286 = vmatprep.subr.mxu0 0.0
    %287 = vmatpush2.msra.mxu0 0.0
    %288 = vmatprep.subr.mxu0 0.0
    %289 = vmatpush2.msra.mxu0 0.0
    %290 = vmatprep.subr.mxu0 0.0
    %291 = vmatpush2.msra.mxu0 0.0
    %292 = vmatprep.mubr.f32.mxu0 0.0
    %293 = vmatmul.mubr.f32.gmra.mxu0 %v205
    %v294 = vpop.f32.mrf.mxu0
    %v295 = vadd.f32 %v203, %v294
    %v296 = vpop.f32.mrf.mxu0
    %297 = vmatprep.mubr.f32.mxu0 0.0
    %298 = vmatmul.mubr.f32.gmra.mxu0 %v208
    %v299 = vpop.f32.mrf.mxu0
    %v300 = vadd.f32 %v203, %v299
    %v301 = vpop.f32.mrf.mxu0
    %302 = vmatprep.mubr.f32.mxu0 0.0
    %303 = vmatmul.mubr.f32.gmra.mxu0 %v211
    %v304 = vpop.f32.mrf.mxu0
    %v305 = vadd.f32 %v203, %v304
    %v306 = vpop.f32.mrf.mxu0
    %307 = vmatprep.mubr.f32.mxu0 0.0
    %308 = vmatmul.mubr.f32.gmra.mxu0 %v214
    %v309 = vpop.f32.mrf.mxu0
    %v310 = vadd.f32 %v203, %v309
    %v311 = vpop.f32.mrf.mxu0
    %312 = vmatprep.mubr.f32.mxu0 0.0
    %313 = vmatmul.mubr.f32.gmra.mxu0 %v217
    %v314 = vpop.f32.mrf.mxu0
    %v315 = vadd.f32 %v203, %v314
    %v316 = vpop.f32.mrf.mxu0
    %317 = vmatprep.mubr.f32.mxu0 0.0
    %318 = vmatmul.mubr.f32.gmra.mxu0 %v220
    %v319 = vpop.f32.mrf.mxu0
    %v320 = vadd.f32 %v203, %v319
    %v321 = vpop.f32.mrf.mxu0
    %322 = vmatprep.mubr.f32.mxu0 0.0
    %323 = vmatmul.mubr.f32.gmra.mxu0 %v223
    %v324 = vpop.f32.mrf.mxu0
    %v325 = vadd.f32 %v203, %v324
    %v326 = vpop.f32.mrf.mxu0
    %327 = vmatprep.mubr.f32.mxu0 0.0
    %328 = vmatmul.mubr.f32.gmra.mxu0 %v226
    %v329 = vpop.f32.mrf.mxu0
    %v330 = vadd.f32 %v203, %v329
    %v331 = vpop.f32.mrf.mxu0
    %332 = vdwg.mxu0
    %v333 = vld [vmem:[#allocation10 + $0x1] sm:$0x1]
    %v334 = vld [vmem:[#allocation10 + $0x2] sm:$0x1]
    %vm335 = vcmask 261120
    %v336 = vsel %vm335, %v295, 0.0
    %337 = vadd.xlane.f32.xlu0 %v336
    %v338 = vpop.xlane.xlu0 %337
    %v339 = vsel %vm335, %v300, 0.0
    %340 = vadd.xlane.f32.xlu0 %v339
    %v341 = vpop.xlane.xlu0 %340
    %v342 = vsel %vm335, %v305, 0.0
    %343 = vadd.xlane.f32.xlu0 %v342
    %v344 = vpop.xlane.xlu0 %343
    %v345 = vsel %vm335, %v310, 0.0
    %346 = vadd.xlane.f32.xlu0 %v345
    %v347 = vpop.xlane.xlu0 %346
    %v348 = vsel %vm335, %v315, 0.0
    %349 = vadd.xlane.f32.xlu0 %v348
    %v350 = vpop.xlane.xlu0 %349
    %v351 = vsel %vm335, %v320, 0.0
    %352 = vadd.xlane.f32.xlu0 %v351
    %v353 = vpop.xlane.xlu0 %352
    %v354 = vsel %vm335, %v325, 0.0
    %355 = vadd.xlane.f32.xlu0 %v354
    %v356 = vpop.xlane.xlu0 %355
    %v357 = vsel %vm335, %v330, 0.0
    %358 = vadd.xlane.f32.xlu0 %v357
    %v359 = vpop.xlane.xlu0 %358
    %v360 = vrcp.pop 32.0
    %v361 = vmul.f32 %v338, %v360
    %v362 = vmul.f32 %v341, %v360
    %v363 = vmul.f32 %v344, %v360
    %v364 = vmul.f32 %v347, %v360
    %v365 = vmul.f32 %v350, %v360
    %v366 = vmul.f32 %v353, %v360
    %v367 = vmul.f32 %v356, %v360
    %v368 = vmul.f32 %v359, %v360
    %v369 = vsub.f32 %v295, %v361
    %v370 = vsub.f32 %v300, %v362
    %v371 = vsub.f32 %v305, %v363
    %v372 = vsub.f32 %v310, %v364
    %v373 = vsub.f32 %v315, %v365
    %v374 = vsub.f32 %v320, %v366
    %v375 = vsub.f32 %v325, %v367
    %v376 = vsub.f32 %v330, %v368
    %v377 = vmul.f32 %v369, %v369
    %v378 = vmul.f32 %v370, %v370
    %v379 = vmul.f32 %v371, %v371
    %v380 = vmul.f32 %v372, %v372
    %v381 = vmul.f32 %v373, %v373
    %v382 = vmul.f32 %v374, %v374
    %v383 = vmul.f32 %v375, %v375
    %v384 = vmul.f32 %v376, %v376
    %v385 = vsel %vm335, %v377, 0.0
    %386 = vadd.xlane.f32.xlu0 %v385
    %v387 = vpop.xlane.xlu0 %386
    %v388 = vsel %vm335, %v378, 0.0
    %389 = vadd.xlane.f32.xlu0 %v388
    %v390 = vpop.xlane.xlu0 %389
    %v391 = vsel %vm335, %v379, 0.0
    %392 = vadd.xlane.f32.xlu0 %v391
    %v393 = vpop.xlane.xlu0 %392
    %v394 = vsel %vm335, %v380, 0.0
    %395 = vadd.xlane.f32.xlu0 %v394
    %v396 = vpop.xlane.xlu0 %395
    %v397 = vsel %vm335, %v381, 0.0
    %398 = vadd.xlane.f32.xlu0 %v397
    %v399 = vpop.xlane.xlu0 %398
    %v400 = vsel %vm335, %v382, 0.0
    %401 = vadd.xlane.f32.xlu0 %v400
    %v402 = vpop.xlane.xlu0 %401
    %v403 = vsel %vm335, %v383, 0.0
    %404 = vadd.xlane.f32.xlu0 %v403
    %v405 = vpop.xlane.xlu0 %404
    %v406 = vsel %vm335, %v384, 0.0
    %407 = vadd.xlane.f32.xlu0 %v406
    %v408 = vpop.xlane.xlu0 %407
    %v409 = vmul.f32 %v387, %v360
    %v410 = vmul.f32 %v390, %v360
    %v411 = vmul.f32 %v393, %v360
    %v412 = vmul.f32 %v396, %v360
    %v413 = vmul.f32 %v399, %v360
    %v414 = vmul.f32 %v402, %v360
    %v415 = vmul.f32 %v405, %v360
    %v416 = vmul.f32 %v408, %v360
    %v417 = vadd.f32 %v409, 1e-05
    %v418 = vadd.f32 %v410, 1e-05
    %v419 = vadd.f32 %v411, 1e-05
    %v420 = vadd.f32 %v412, 1e-05
    %v421 = vadd.f32 %v413, 1e-05
    %v422 = vadd.f32 %v414, 1e-05
    %v423 = vadd.f32 %v415, 1e-05
    %v424 = vadd.f32 %v416, 1e-05
    %v425 = vrsqrt.pop %v417
    %v426 = vrsqrt.pop %v418
    %v427 = vrsqrt.pop %v419
    %v428 = vrsqrt.pop %v420
    %v429 = vrsqrt.pop %v421
    %v430 = vrsqrt.pop %v422
    %v431 = vrsqrt.pop %v423
    %v432 = vrsqrt.pop %v424
    %v433 = vmul.f32 %v369, %v425
    %v434 = vmul.f32 %v370, %v426
    %v435 = vmul.f32 %v371, %v427
    %v436 = vmul.f32 %v372, %v428
    %v437 = vmul.f32 %v373, %v429
    %v438 = vmul.f32 %v374, %v430
    %v439 = vmul.f32 %v375, %v431
    %v440 = vmul.f32 %v376, %v432
    %v441 = vlaneseq
    %v442 = vshrl.u32 %v441, 7
    %v443 = vsub.s32 0, %v442
    %v444 = vrot.slane %v333, %v443
    %v445 = vmul.f32 %v433, %v444
    %v446 = vmul.f32 %v434, %v444
    %v447 = vmul.f32 %v435, %v444
    %v448 = vmul.f32 %v436, %v444
    %v449 = vmul.f32 %v437, %v444
    %v450 = vmul.f32 %v438, %v444
    %v451 = vmul.f32 %v439, %v444
    %v452 = vmul.f32 %v440, %v444
    %v453 = vlaneseq
    %v454 = vshrl.u32 %v453, 7
    %v455 = vsub.s32 0, %v454
    %v456 = vrot.slane %v334, %v455
    %v457 = vadd.f32 %v445, %v456
    %v458 = vadd.f32 %v446, %v456
    %v459 = vadd.f32 %v447, %v456
    %v460 = vadd.f32 %v448, %v456
    %v461 = vadd.f32 %v449, %v456
    %v462 = vadd.f32 %v450, %v456
    %v463 = vadd.f32 %v451, %v456
    %v464 = vadd.f32 %v452, %v456
    %v465 = vmax.f32 %v457, 0.0
    %v466 = vmax.f32 %v458, 0.0
    %v467 = vmax.f32 %v459, 0.0
    %v468 = vmax.f32 %v460, 0.0
    %v469 = vmax.f32 %v461, 0.0
    %v470 = vmax.f32 %v462, 0.0
    %v471 = vmax.f32 %v463, 0.0
    %v472 = vmax.f32 %v464, 0.0
    %v473 = vld [vmem:[%s3] sm:$0xff]
    %v474 = vld [vmem:[%s3 + $0x8] sm:$0xff]
    %v475 = vld [vmem:[%s3 + $0x10] sm:$0xff]
    %v476 = vld [vmem:[%s3 + $0x18] sm:$0xff]
    %v477 = vld [vmem:[#allocation10 + $0x3] sm:$0x1]
    %v478 = vlaneseq
    %v479 = vshrl.u32 %v478, 7
    %v480 = vsub.s32 0, %v479
    %v481 = vrot.slane %v477, %v480
    %v483 = vsel %vm335, %v465, 0
    %v486 = vsel %vm335, %v466, 0
    %v489 = vsel %vm335, %v467, 0
    %v492 = vsel %vm335, %v468, 0
    %v495 = vsel %vm335, %v469, 0
    %v498 = vsel %vm335, %v470, 0
    %v501 = vsel %vm335, %v471, 0
    %v504 = vsel %vm335, %v472, 0
    %506 = vmatprep.subr.mxu0 0.0
    %507 = vmatpush1.msra.mxu0 0.0
    %508 = vmatprep.subr.mxu0 0.0
    %509 = vmatpush1.msra.mxu0 0.0
    %510 = vmatprep.subr.mxu0 0.0
    %511 = vmatpush1.msra.mxu0 0.0
    %512 = vmatprep.subr.mxu0 0.0
    %513 = vmatpush1.msra.mxu0 0.0
    %514 = vmatprep.subr.mxu0 0.0
    %515 = vmatpush1.msra.mxu0 0.0
    %516 = vmatprep.subr.mxu0 0.0
    %517 = vmatpush1.msra.mxu0 0.0
    %518 = vmatprep.subr.mxu0 0.0
    %519 = vmatpush1.msra.mxu0 0.0
    %520 = vmatprep.subr.mxu0 0.0
    %521 = vmatpush1.msra.mxu0 0.0
    %522 = vmatprep.subr.mxu0 0.0
    %523 = vmatpush1.msra.mxu0 0.0
    %524 = vmatprep.subr.mxu0 0.0
    %525 = vmatpush1.msra.mxu0 0.0
    %526 = vmatprep.subr.mxu0 0.0
    %527 = vmatpush1.msra.mxu0 0.0
    %528 = vmatprep.subr.mxu0 0.0
    %529 = vmatpush1.msra.mxu0 0.0
    %530 = vmatprep.subr.mxu0 0.0
    %531 = vmatpush1.msra.mxu0 %v476
    %532 = vmatprep.subr.mxu0 0.0
    %533 = vmatpush1.msra.mxu0 %v475
    %534 = vmatprep.subr.mxu0 0.0
    %535 = vmatpush1.msra.mxu0 %v474
    %536 = vmatprep.subr.mxu0 0.0
    %537 = vmatpush1.msra.mxu0 %v473
    %538 = vmatprep.subr.mxu0 0.0
    %539 = vmatpush2.msra.mxu0 0.0
    %540 = vmatprep.subr.mxu0 0.0
    %541 = vmatpush2.msra.mxu0 0.0
    %542 = vmatprep.subr.mxu0 0.0
    %543 = vmatpush2.msra.mxu0 0.0
    %544 = vmatprep.subr.mxu0 0.0
    %545 = vmatpush2.msra.mxu0 0.0
    %546 = vmatprep.subr.mxu0 0.0
    %547 = vmatpush2.msra.mxu0 0.0
    %548 = vmatprep.subr.mxu0 0.0
    %549 = vmatpush2.msra.mxu0 0.0
    %550 = vmatprep.subr.mxu0 0.0
    %551 = vmatpush2.msra.mxu0 0.0
    %552 = vmatprep.subr.mxu0 0.0
    %553 = vmatpush2.msra.mxu0 0.0
    %554 = vmatprep.subr.mxu0 0.0
    %555 = vmatpush2.msra.mxu0 0.0
    %556 = vmatprep.subr.mxu0 0.0
    %557 = vmatpush2.msra.mxu0 0.0
    %558 = vmatprep.subr.mxu0 0.0
    %559 = vmatpush2.msra.mxu0 0.0
    %560 = vmatprep.subr.mxu0 0.0
    %561 = vmatpush2.msra.mxu0 0.0
    %562 = vmatprep.subr.mxu0 0.0
    %563 = vmatpush2.msra.mxu0 0.0
    %564 = vmatprep.subr.mxu0 0.0
    %565 = vmatpush2.msra.mxu0 0.0
    %566 = vmatprep.subr.mxu0 0.0
    %567 = vmatpush2.msra.mxu0 0.0
    %568 = vmatprep.subr.mxu0 0.0
    %569 = vmatpush2.msra.mxu0 0.0
    %570 = vmatprep.mubr.f32.mxu0 0.0
    %571 = vmatmul.mubr.f32.gmra.mxu0 %v483
    %v572 = vpop.f32.mrf.mxu0
    %v573 = vadd.f32 %v481, %v572
    %v574 = vpop.f32.mrf.mxu0
    %575 = vmatprep.mubr.f32.mxu0 0.0
    %576 = vmatmul.mubr.f32.gmra.mxu0 %v486
    %v577 = vpop.f32.mrf.mxu0
    %v578 = vadd.f32 %v481, %v577
    %v579 = vpop.f32.mrf.mxu0
    %580 = vmatprep.mubr.f32.mxu0 0.0
    %581 = vmatmul.mubr.f32.gmra.mxu0 %v489
    %v582 = vpop.f32.mrf.mxu0
    %v583 = vadd.f32 %v481, %v582
    %v584 = vpop.f32.mrf.mxu0
    %585 = vmatprep.mubr.f32.mxu0 0.0
    %586 = vmatmul.mubr.f32.gmra.mxu0 %v492
    %v587 = vpop.f32.mrf.mxu0
    %v588 = vadd.f32 %v481, %v587
    %v589 = vpop.f32.mrf.mxu0
    %590 = vmatprep.mubr.f32.mxu0 0.0
    %591 = vmatmul.mubr.f32.gmra.mxu0 %v495
    %v592 = vpop.f32.mrf.mxu0
    %v593 = vadd.f32 %v481, %v592
    %v594 = vpop.f32.mrf.mxu0
    %595 = vmatprep.mubr.f32.mxu0 0.0
    %596 = vmatmul.mubr.f32.gmra.mxu0 %v498
    %v597 = vpop.f32.mrf.mxu0
    %v598 = vadd.f32 %v481, %v597
    %v599 = vpop.f32.mrf.mxu0
    %600 = vmatprep.mubr.f32.mxu0 0.0
    %601 = vmatmul.mubr.f32.gmra.mxu0 %v501
    %v602 = vpop.f32.mrf.mxu0
    %v603 = vadd.f32 %v481, %v602
    %v604 = vpop.f32.mrf.mxu0
    %605 = vmatprep.mubr.f32.mxu0 0.0
    %606 = vmatmul.mubr.f32.gmra.mxu0 %v504
    %v607 = vpop.f32.mrf.mxu0
    %v608 = vadd.f32 %v481, %v607
    %v609 = vpop.f32.mrf.mxu0
    %610 = vdwg.mxu0
    %611 = vst [vmem:[#allocation2] sm:$0xff] %v573
    %612 = vst [vmem:[#allocation2 + $0x8] sm:$0xff] %v578
    %613 = vst [vmem:[#allocation2 + $0x10] sm:$0xff] %v583
    %614 = vst [vmem:[#allocation2 + $0x18] sm:$0xff] %v588
    %615 = vst [vmem:[#allocation2 + $0x20] sm:$0xff] %v593
    %616 = vst [vmem:[#allocation2 + $0x28] sm:$0xff] %v598
    %617 = vst [vmem:[#allocation2 + $0x30] sm:$0xff] %v603
    %618 = vst [vmem:[#allocation2 + $0x38] sm:$0xff] %v608
    %v619 = vld [vmem:[%s4] sm:$0xff]
    %v620 = vld [vmem:[%s4 + $0x8] sm:$0xff]
    %v621 = vld [vmem:[%s4 + $0x10] sm:$0xff]
    %v622 = vld [vmem:[%s4 + $0x18] sm:$0xff]
    %v623 = vld [vmem:[#allocation10 + $0x4] sm:$0x1]
    %v624 = vlaneseq
    %v625 = vshrl.u32 %v624, 7
    %v626 = vsub.s32 0, %v625
    %v627 = vrot.slane %v623, %v626
    %v628 = vld [vmem:[#allocation10 + $0x5] sm:$0x1]
    %v629 = vlaneseq
    %v630 = vshrl.u32 %v629, 7
    %v631 = vsub.s32 0, %v630
    %v632 = vrot.slane %v628, %v631
    %v633 = vld [vmem:[#allocation10 + $0x6] sm:$0x1]
    %v634 = vlaneseq
    %v635 = vshrl.u32 %v634, 7
    %v636 = vsub.s32 0, %v635
    %v637 = vrot.slane %v633, %v636
    %v638 = vld [vmem:[#allocation4] sm:$0xff]
    %v639 = vld [vmem:[#allocation2] sm:$0xff]
    %v641 = vsel %vm335, %v638, 0
    %643 = vmatprep.subr.mxu0 0.0
    %644 = vmatpush1.msra.mxu0 0.0
    %645 = vmatprep.subr.mxu0 0.0
    %646 = vmatpush1.msra.mxu0 0.0
    %647 = vmatprep.subr.mxu0 0.0
    %648 = vmatpush1.msra.mxu0 0.0
    %649 = vmatprep.subr.mxu0 0.0
    %650 = vmatpush1.msra.mxu0 0.0
    %651 = vmatprep.subr.mxu0 0.0
    %652 = vmatpush1.msra.mxu0 0.0
    %653 = vmatprep.subr.mxu0 0.0
    %654 = vmatpush1.msra.mxu0 0.0
    %655 = vmatprep.subr.mxu0 0.0
    %656 = vmatpush1.msra.mxu0 0.0
    %657 = vmatprep.subr.mxu0 0.0
    %658 = vmatpush1.msra.mxu0 0.0
    %659 = vmatprep.subr.mxu0 0.0
    %660 = vmatpush1.msra.mxu0 0.0
    %661 = vmatprep.subr.mxu0 0.0
    %662 = vmatpush1.msra.mxu0 0.0
    %663 = vmatprep.subr.mxu0 0.0
    %664 = vmatpush1.msra.mxu0 0.0
    %665 = vmatprep.subr.mxu0 0.0
    %666 = vmatpush1.msra.mxu0 0.0
    %667 = vmatprep.subr.mxu0 0.0
    %668 = vmatpush1.msra.mxu0 %v622
    %669 = vmatprep.subr.mxu0 0.0
    %670 = vmatpush1.msra.mxu0 %v621
    %671 = vmatprep.subr.mxu0 0.0
    %672 = vmatpush1.msra.mxu0 %v620
    %673 = vmatprep.subr.mxu0 0.0
    %674 = vmatpush1.msra.mxu0 %v619
    %675 = vmatprep.subr.mxu0 0.0
    %676 = vmatpush2.msra.mxu0 0.0
    %677 = vmatprep.subr.mxu0 0.0
    %678 = vmatpush2.msra.mxu0 0.0
    %679 = vmatprep.subr.mxu0 0.0
    %680 = vmatpush2.msra.mxu0 0.0
    %681 = vmatprep.subr.mxu0 0.0
    %682 = vmatpush2.msra.mxu0 0.0
    %683 = vmatprep.subr.mxu0 0.0
    %684 = vmatpush2.msra.mxu0 0.0
    %685 = vmatprep.subr.mxu0 0.0
    %686 = vmatpush2.msra.mxu0 0.0
    %687 = vmatprep.subr.mxu0 0.0
    %688 = vmatpush2.msra.mxu0 0.0
    %689 = vmatprep.subr.mxu0 0.0
    %690 = vmatpush2.msra.mxu0 0.0
    %691 = vmatprep.subr.mxu0 0.0
    %692 = vmatpush2.msra.mxu0 0.0
    %693 = vmatprep.subr.mxu0 0.0
    %694 = vmatpush2.msra.mxu0 0.0
    %695 = vmatprep.subr.mxu0 0.0
    %696 = vmatpush2.msra.mxu0 0.0
    %697 = vmatprep.subr.mxu0 0.0
    %698 = vmatpush2.msra.mxu0 0.0
    %699 = vmatprep.subr.mxu0 0.0
    %700 = vmatpush2.msra.mxu0 0.0
    %701 = vmatprep.subr.mxu0 0.0
    %702 = vmatpush2.msra.mxu0 0.0
    %703 = vmatprep.subr.mxu0 0.0
    %704 = vmatpush2.msra.mxu0 0.0
    %705 = vmatprep.subr.mxu0 0.0
    %706 = vmatpush2.msra.mxu0 0.0
    %707 = vmatprep.mubr.f32.mxu0 0.0
    %708 = vmatmul.mubr.f32.gmra.mxu0 %v641
    %v709 = vpop.f32.mrf.mxu0
    %v710 = vadd.f32 %v627, %v709
    %v711 = vpop.f32.mrf.mxu0
    %712 = vdwg.mxu0
    %v713 = vadd.f32 %v639, %v710
    %v714 = vxor.u32 %v713, 2147483648
    %v715 = vmul.f32 %v714, 1.442695
    %v716 = vpow.pop %v715
    %v717 = vadd.f32 %v716, 1.0
    %v718 = vrcp.pop %v717
    %v719 = vmul.f32 1.0, %v718
    %721 = vrot.lane.b32.xlu0 %v710, 64
    %v722 = vpop.permute.xlu0 %721
    %v724 = vmul.f32 %v719, %v722
    %726 = vrot.lane.b32.xlu0 %v724, 64
    %v727 = vpop.permute.xlu0 %726
    %v729 = vadd.f32 %v639, %v727
    %v730 = vtanh.pop %v729
    %v731 = vsub.f32 1.0, %v719
    %733 = vrot.lane.b32.xlu0 %v730, 96
    %v734 = vpop.permute.xlu0 %733
    %v736 = vmul.f32 %v731, %v734
    %737 = vrot.lane.b32.xlu0 %v638, 32
    %v738 = vpop.permute.xlu0 %737
    %v740 = vmul.f32 %v719, %v738
    %v741 = vadd.f32 %v736, %v740
    %743 = vrot.lane.b32.xlu0 %v741, 96
    %v744 = vpop.permute.xlu0 %743
    %v746 = vsel %vm335, %v744, 0.0
    %747 = vadd.xlane.f32.xlu0 %v746
    %v748 = vpop.xlane.xlu0 %747
    %v749 = vmul.f32 %v748, %v360
    %v750 = vsub.f32 %v741, %v749
    %v751 = vmul.f32 %v750, %v750
    %753 = vrot.lane.b32.xlu0 %v751, 96
    %v754 = vpop.permute.xlu0 %753
    %v756 = vsel %vm335, %v754, 0.0
    %757 = vadd.xlane.f32.xlu0 %v756
    %v758 = vpop.xlane.xlu0 %757
    %v759 = vmul.f32 %v758, %v360
    %v760 = vadd.f32 %v759, 1e-05
    %v761 = vrsqrt.pop %v760
    %v762 = vmul.f32 %v750, %v761
    %764 = vrot.lane.b32.xlu0 %v632, 32
    %v765 = vpop.permute.xlu0 %764
    %v767 = vmul.f32 %v762, %v765
    %769 = vrot.lane.b32.xlu0 %v637, 32
    %v770 = vpop.permute.xlu0 %769
    %v772 = vadd.f32 %v767, %v770
    %774 = vrot.lane.b32.xlu0 %v772, 96
    %v775 = vpop.permute.xlu0 %774
    %777 = vst.msk [vmem:[#allocation3] sm:$0xff] %vm335, %v775
    %s778 = scalar_lea.vmem [#allocation2], 8
    %v779 = vld [vmem:[%s778] sm:$0xff]
    %v780 = vsel %vm335, %v775, 0
    %782 = vmatprep.subr.mxu0 0.0
    %783 = vmatpush1.msra.mxu0 0.0
    %784 = vmatprep.subr.mxu0 0.0
    %785 = vmatpush1.msra.mxu0 0.0
    %786 = vmatprep.subr.mxu0 0.0
    %787 = vmatpush1.msra.mxu0 0.0
    %788 = vmatprep.subr.mxu0 0.0
    %789 = vmatpush1.msra.mxu0 0.0
    %790 = vmatprep.subr.mxu0 0.0
    %791 = vmatpush1.msra.mxu0 0.0
    %792 = vmatprep.subr.mxu0 0.0
    %793 = vmatpush1.msra.mxu0 0.0
    %794 = vmatprep.subr.mxu0 0.0
    %795 = vmatpush1.msra.mxu0 0.0
    %796 = vmatprep.subr.mxu0 0.0
    %797 = vmatpush1.msra.mxu0 0.0
    %798 = vmatprep.subr.mxu0 0.0
    %799 = vmatpush1.msra.mxu0 0.0
    %800 = vmatprep.subr.mxu0 0.0
    %801 = vmatpush1.msra.mxu0 0.0
    %802 = vmatprep.subr.mxu0 0.0
    %803 = vmatpush1.msra.mxu0 0.0
    %804 = vmatprep.subr.mxu0 0.0
    %805 = vmatpush1.msra.mxu0 0.0
    %806 = vmatprep.subr.mxu0 0.0
    %807 = vmatpush1.msra.mxu0 %v622
    %808 = vmatprep.subr.mxu0 0.0
    %809 = vmatpush1.msra.mxu0 %v621
    %810 = vmatprep.subr.mxu0 0.0
    %811 = vmatpush1.msra.mxu0 %v620
    %812 = vmatprep.subr.mxu0 0.0
    %813 = vmatpush1.msra.mxu0 %v619
    %814 = vmatprep.subr.mxu0 0.0
    %815 = vmatpush2.msra.mxu0 0.0
    %816 = vmatprep.subr.mxu0 0.0
    %817 = vmatpush2.msra.mxu0 0.0
    %818 = vmatprep.subr.mxu0 0.0
    %819 = vmatpush2.msra.mxu0 0.0
    %820 = vmatprep.subr.mxu0 0.0
    %821 = vmatpush2.msra.mxu0 0.0
    %822 = vmatprep.subr.mxu0 0.0
    %823 = vmatpush2.msra.mxu0 0.0
    %824 = vmatprep.subr.mxu0 0.0
    %825 = vmatpush2.msra.mxu0 0.0
    %826 = vmatprep.subr.mxu0 0.0
    %827 = vmatpush2.msra.mxu0 0.0
    %828 = vmatprep.subr.mxu0 0.0
    %829 = vmatpush2.msra.mxu0 0.0
    %830 = vmatprep.subr.mxu0 0.0
    %831 = vmatpush2.msra.mxu0 0.0
    %832 = vmatprep.subr.mxu0 0.0
    %833 = vmatpush2.msra.mxu0 0.0
    %834 = vmatprep.subr.mxu0 0.0
    %835 = vmatpush2.msra.mxu0 0.0
    %836 = vmatprep.subr.mxu0 0.0
    %837 = vmatpush2.msra.mxu0 0.0
    %838 = vmatprep.subr.mxu0 0.0
    %839 = vmatpush2.msra.mxu0 0.0
    %840 = vmatprep.subr.mxu0 0.0
    %841 = vmatpush2.msra.mxu0 0.0
    %842 = vmatprep.subr.mxu0 0.0
    %843 = vmatpush2.msra.mxu0 0.0
    %844 = vmatprep.subr.mxu0 0.0
    %845 = vmatpush2.msra.mxu0 0.0
    %846 = vmatprep.mubr.f32.mxu0 0.0
    %847 = vmatmul.mubr.f32.gmra.mxu0 %v780
    %v848 = vpop.f32.mrf.mxu0
    %v849 = vadd.f32 %v627, %v848
    %v850 = vpop.f32.mrf.mxu0
    %851 = vdwg.mxu0
    %v852 = vadd.f32 %v779, %v849
    %v853 = vxor.u32 %v852, 2147483648
    %v854 = vmul.f32 %v853, 1.442695
    %v855 = vpow.pop %v854
    %v856 = vadd.f32 %v855, 1.0
    %v857 = vrcp.pop %v856
    %v858 = vmul.f32 1.0, %v857
    %860 = vrot.lane.b32.xlu0 %v849, 64
    %v861 = vpop.permute.xlu0 %860
    %v863 = vmul.f32 %v858, %v861
    %865 = vrot.lane.b32.xlu0 %v863, 64
    %v866 = vpop.permute.xlu0 %865
    %v868 = vadd.f32 %v779, %v866
    %v869 = vtanh.pop %v868
    %v870 = vsub.f32 1.0, %v858
    %872 = vrot.lane.b32.xlu0 %v869, 96
    %v873 = vpop.permute.xlu0 %872
    %v875 = vmul.f32 %v870, %v873
    %v876 = vmul.f32 %v858, %v772
    %v877 = vadd.f32 %v875, %v876
    %879 = vrot.lane.b32.xlu0 %v877, 96
    %v880 = vpop.permute.xlu0 %879
    %v882 = vsel %vm335, %v880, 0.0
    %883 = vadd.xlane.f32.xlu0 %v882
    %v884 = vpop.xlane.xlu0 %883
    %v885 = vmul.f32 %v884, %v360
    %v886 = vsub.f32 %v877, %v885
    %v887 = vmul.f32 %v886, %v886
    %889 = vrot.lane.b32.xlu0 %v887, 96
    %v890 = vpop.permute.xlu0 %889
    %v892 = vsel %vm335, %v890, 0.0
    %893 = vadd.xlane.f32.xlu0 %v892
    %v894 = vpop.xlane.xlu0 %893
    %v895 = vmul.f32 %v894, %v360
    %v896 = vadd.f32 %v895, 1e-05
    %v897 = vrsqrt.pop %v896
    %v898 = vmul.f32 %v886, %v897
    %v899 = vmul.f32 %v898, %v765
    %v900 = vadd.f32 %v899, %v770
    %902 = vrot.lane.b32.xlu0 %v900, 96
    %v903 = vpop.permute.xlu0 %902
    %s905 = scalar_lea.vmem [#allocation3], 8
    %906 = vst.msk [vmem:[%s905] sm:$0xff] %vm335, %v903
    %s907 = scalar_lea.vmem [#allocation2], 16
    %v908 = vld [vmem:[%s907] sm:$0xff]
    %v909 = vsel %vm335, %v903, 0
    %911 = vmatprep.subr.mxu0 0.0
    %912 = vmatpush1.msra.mxu0 0.0
    %913 = vmatprep.subr.mxu0 0.0
    %914 = vmatpush1.msra.mxu0 0.0
    %915 = vmatprep.subr.mxu0 0.0
    %916 = vmatpush1.msra.mxu0 0.0
    %917 = vmatprep.subr.mxu0 0.0
    %918 = vmatpush1.msra.mxu0 0.0
    %919 = vmatprep.subr.mxu0 0.0
    %920 = vmatpush1.msra.mxu0 0.0
    %921 = vmatprep.subr.mxu0 0.0
    %922 = vmatpush1.msra.mxu0 0.0
    %923 = vmatprep.subr.mxu0 0.0
    %924 = vmatpush1.msra.mxu0 0.0
    %925 = vmatprep.subr.mxu0 0.0
    %926 = vmatpush1.msra.mxu0 0.0
    %927 = vmatprep.subr.mxu0 0.0
    %928 = vmatpush1.msra.mxu0 0.0
    %929 = vmatprep.subr.mxu0 0.0
    %930 = vmatpush1.msra.mxu0 0.0
    %931 = vmatprep.subr.mxu0 0.0
    %932 = vmatpush1.msra.mxu0 0.0
    %933 = vmatprep.subr.mxu0 0.0
    %934 = vmatpush1.msra.mxu0 0.0
    %935 = vmatprep.subr.mxu0 0.0
    %936 = vmatpush1.msra.mxu0 %v622
    %937 = vmatprep.subr.mxu0 0.0
    %938 = vmatpush1.msra.mxu0 %v621
    %939 = vmatprep.subr.mxu0 0.0
    %940 = vmatpush1.msra.mxu0 %v620
    %941 = vmatprep.subr.mxu0 0.0
    %942 = vmatpush1.msra.mxu0 %v619
    %943 = vmatprep.subr.mxu0 0.0
    %944 = vmatpush2.msra.mxu0 0.0
    %945 = vmatprep.subr.mxu0 0.0
    %946 = vmatpush2.msra.mxu0 0.0
    %947 = vmatprep.subr.mxu0 0.0
    %948 = vmatpush2.msra.mxu0 0.0
    %949 = vmatprep.subr.mxu0 0.0
    %950 = vmatpush2.msra.mxu0 0.0
    %951 = vmatprep.subr.mxu0 0.0
    %952 = vmatpush2.msra.mxu0 0.0
    %953 = vmatprep.subr.mxu0 0.0
    %954 = vmatpush2.msra.mxu0 0.0
    %955 = vmatprep.subr.mxu0 0.0
    %956 = vmatpush2.msra.mxu0 0.0
    %957 = vmatprep.subr.mxu0 0.0
    %958 = vmatpush2.msra.mxu0 0.0
    %959 = vmatprep.subr.mxu0 0.0
    %960 = vmatpush2.msra.mxu0 0.0
    %961 = vmatprep.subr.mxu0 0.0
    %962 = vmatpush2.msra.mxu0 0.0
    %963 = vmatprep.subr.mxu0 0.0
    %964 = vmatpush2.msra.mxu0 0.0
    %965 = vmatprep.subr.mxu0 0.0
    %966 = vmatpush2.msra.mxu0 0.0
    %967 = vmatprep.subr.mxu0 0.0
    %968 = vmatpush2.msra.mxu0 0.0
    %969 = vmatprep.subr.mxu0 0.0
    %970 = vmatpush2.msra.mxu0 0.0
    %971 = vmatprep.subr.mxu0 0.0
    %972 = vmatpush2.msra.mxu0 0.0
    %973 = vmatprep.subr.mxu0 0.0
    %974 = vmatpush2.msra.mxu0 0.0
    %975 = vmatprep.mubr.f32.mxu0 0.0
    %976 = vmatmul.mubr.f32.gmra.mxu0 %v909
    %v977 = vpop.f32.mrf.mxu0
    %v978 = vadd.f32 %v627, %v977
    %v979 = vpop.f32.mrf.mxu0
    %980 = vdwg.mxu0
    %v981 = vadd.f32 %v908, %v978
    %v982 = vxor.u32 %v981, 2147483648
    %v983 = vmul.f32 %v982, 1.442695
    %v984 = vpow.pop %v983
    %v985 = vadd.f32 %v984, 1.0
    %v986 = vrcp.pop %v985
    %v987 = vmul.f32 1.0, %v986
    %989 = vrot.lane.b32.xlu0 %v978, 64
    %v990 = vpop.permute.xlu0 %989
    %v992 = vmul.f32 %v987, %v990
    %994 = vrot.lane.b32.xlu0 %v992, 64
    %v995 = vpop.permute.xlu0 %994
    %v997 = vadd.f32 %v908, %v995
    %v998 = vtanh.pop %v997
    %v999 = vsub.f32 1.0, %v987
    %1001 = vrot.lane.b32.xlu0 %v998, 96
    %v1002 = vpop.permute.xlu0 %1001
    %v1004 = vmul.f32 %v999, %v1002
    %v1005 = vmul.f32 %v987, %v900
    %v1006 = vadd.f32 %v1004, %v1005
    %1008 = vrot.lane.b32.xlu0 %v1006, 96
    %v1009 = vpop.permute.xlu0 %1008
    %v1011 = vsel %vm335, %v1009, 0.0
    %1012 = vadd.xlane.f32.xlu0 %v1011
    %v1013 = vpop.xlane.xlu0 %1012
    %v1014 = vmul.f32 %v1013, %v360
    %v1015 = vsub.f32 %v1006, %v1014
    %v1016 = vmul.f32 %v1015, %v1015
    %1018 = vrot.lane.b32.xlu0 %v1016, 96
    %v1019 = vpop.permute.xlu0 %1018
    %v1021 = vsel %vm335, %v1019, 0.0
    %1022 = vadd.xlane.f32.xlu0 %v1021
    %v1023 = vpop.xlane.xlu0 %1022
    %v1024 = vmul.f32 %v1023, %v360
    %v1025 = vadd.f32 %v1024, 1e-05
    %v1026 = vrsqrt.pop %v1025
    %v1027 = vmul.f32 %v1015, %v1026
    %v1028 = vmul.f32 %v1027, %v765
    %v1029 = vadd.f32 %v1028, %v770
    %1031 = vrot.lane.b32.xlu0 %v1029, 96
    %v1032 = vpop.permute.xlu0 %1031
    %s1034 = scalar_lea.vmem [#allocation3], 16
    %1035 = vst.msk [vmem:[%s1034] sm:$0xff] %vm335, %v1032
    %s1036 = scalar_lea.vmem [#allocation2], 24
    %v1037 = vld [vmem:[%s1036] sm:$0xff]
    %v1038 = vsel %vm335, %v1032, 0
    %1040 = vmatprep.subr.mxu0 0.0
    %1041 = vmatpush1.msra.mxu0 0.0
    %1042 = vmatprep.subr.mxu0 0.0
    %1043 = vmatpush1.msra.mxu0 0.0
    %1044 = vmatprep.subr.mxu0 0.0
    %1045 = vmatpush1.msra.mxu0 0.0
    %1046 = vmatprep.subr.mxu0 0.0
    %1047 = vmatpush1.msra.mxu0 0.0
    %1048 = vmatprep.subr.mxu0 0.0
    %1049 = vmatpush1.msra.mxu0 0.0
    %1050 = vmatprep.subr.mxu0 0.0
    %1051 = vmatpush1.msra.mxu0 0.0
    %1052 = vmatprep.subr.mxu0 0.0
    %1053 = vmatpush1.msra.mxu0 0.0
    %1054 = vmatprep.subr.mxu0 0.0
    %1055 = vmatpush1.msra.mxu0 0.0
    %1056 = vmatprep.subr.mxu0 0.0
    %1057 = vmatpush1.msra.mxu0 0.0
    %1058 = vmatprep.subr.mxu0 0.0
    %1059 = vmatpush1.msra.mxu0 0.0
    %1060 = vmatprep.subr.mxu0 0.0
    %1061 = vmatpush1.msra.mxu0 0.0
    %1062 = vmatprep.subr.mxu0 0.0
    %1063 = vmatpush1.msra.mxu0 0.0
    %1064 = vmatprep.subr.mxu0 0.0
    %1065 = vmatpush1.msra.mxu0 %v622
    %1066 = vmatprep.subr.mxu0 0.0
    %1067 = vmatpush1.msra.mxu0 %v621
    %1068 = vmatprep.subr.mxu0 0.0
    %1069 = vmatpush1.msra.mxu0 %v620
    %1070 = vmatprep.subr.mxu0 0.0
    %1071 = vmatpush1.msra.mxu0 %v619
    %1072 = vmatprep.subr.mxu0 0.0
    %1073 = vmatpush2.msra.mxu0 0.0
    %1074 = vmatprep.subr.mxu0 0.0
    %1075 = vmatpush2.msra.mxu0 0.0
    %1076 = vmatprep.subr.mxu0 0.0
    %1077 = vmatpush2.msra.mxu0 0.0
    %1078 = vmatprep.subr.mxu0 0.0
    %1079 = vmatpush2.msra.mxu0 0.0
    %1080 = vmatprep.subr.mxu0 0.0
    %1081 = vmatpush2.msra.mxu0 0.0
    %1082 = vmatprep.subr.mxu0 0.0
    %1083 = vmatpush2.msra.mxu0 0.0
    %1084 = vmatprep.subr.mxu0 0.0
    %1085 = vmatpush2.msra.mxu0 0.0
    %1086 = vmatprep.subr.mxu0 0.0
    %1087 = vmatpush2.msra.mxu0 0.0
    %1088 = vmatprep.subr.mxu0 0.0
    %1089 = vmatpush2.msra.mxu0 0.0
    %1090 = vmatprep.subr.mxu0 0.0
    %1091 = vmatpush2.msra.mxu0 0.0
    %1092 = vmatprep.subr.mxu0 0.0
    %1093 = vmatpush2.msra.mxu0 0.0
    %1094 = vmatprep.subr.mxu0 0.0
    %1095 = vmatpush2.msra.mxu0 0.0
    %1096 = vmatprep.subr.mxu0 0.0
    %1097 = vmatpush2.msra.mxu0 0.0
    %1098 = vmatprep.subr.mxu0 0.0
    %1099 = vmatpush2.msra.mxu0 0.0
    %1100 = vmatprep.subr.mxu0 0.0
    %1101 = vmatpush2.msra.mxu0 0.0
    %1102 = vmatprep.subr.mxu0 0.0
    %1103 = vmatpush2.msra.mxu0 0.0
    %1104 = vmatprep.mubr.f32.mxu0 0.0
    %1105 = vmatmul.mubr.f32.gmra.mxu0 %v1038
    %v1106 = vpop.f32.mrf.mxu0
    %v1107 = vadd.f32 %v627, %v1106
    %v1108 = vpop.f32.mrf.mxu0
    %1109 = vdwg.mxu0
    %v1110 = vadd.f32 %v1037, %v1107
    %v1111 = vxor.u32 %v1110, 2147483648
    %v1112 = vmul.f32 %v1111, 1.442695
    %v1113 = vpow.pop %v1112
    %v1114 = vadd.f32 %v1113, 1.0
    %v1115 = vrcp.pop %v1114
    %v1116 = vmul.f32 1.0, %v1115
    %1118 = vrot.lane.b32.xlu0 %v1107, 64
    %v1119 = vpop.permute.xlu0 %1118
    %v1121 = vmul.f32 %v1116, %v1119
    %1123 = vrot.lane.b32.xlu0 %v1121, 64
    %v1124 = vpop.permute.xlu0 %1123
    %v1126 = vadd.f32 %v1037, %v1124
    %v1127 = vtanh.pop %v1126
    %v1128 = vsub.f32 1.0, %v1116
    %1130 = vrot.lane.b32.xlu0 %v1127, 96
    %v1131 = vpop.permute.xlu0 %1130
    %v1133 = vmul.f32 %v1128, %v1131
    %v1134 = vmul.f32 %v1116, %v1029
    %v1135 = vadd.f32 %v1133, %v1134
    %1137 = vrot.lane.b32.xlu0 %v1135, 96
    %v1138 = vpop.permute.xlu0 %1137
    %v1140 = vsel %vm335, %v1138, 0.0
    %1141 = vadd.xlane.f32.xlu0 %v1140
    %v1142 = vpop.xlane.xlu0 %1141
    %v1143 = vmul.f32 %v1142, %v360
    %v1144 = vsub.f32 %v1135, %v1143
    %v1145 = vmul.f32 %v1144, %v1144
    %1147 = vrot.lane.b32.xlu0 %v1145, 96
    %v1148 = vpop.permute.xlu0 %1147
    %v1150 = vsel %vm335, %v1148, 0.0
    %1151 = vadd.xlane.f32.xlu0 %v1150
    %v1152 = vpop.xlane.xlu0 %1151
    %v1153 = vmul.f32 %v1152, %v360
    %v1154 = vadd.f32 %v1153, 1e-05
    %v1155 = vrsqrt.pop %v1154
    %v1156 = vmul.f32 %v1144, %v1155
    %v1157 = vmul.f32 %v1156, %v765
    %v1158 = vadd.f32 %v1157, %v770
    %1160 = vrot.lane.b32.xlu0 %v1158, 96
    %v1161 = vpop.permute.xlu0 %1160
    %s1163 = scalar_lea.vmem [#allocation3], 24
    %1164 = vst.msk [vmem:[%s1163] sm:$0xff] %vm335, %v1161
    %s1165 = scalar_lea.vmem [#allocation2], 32
    %v1166 = vld [vmem:[%s1165] sm:$0xff]
    %v1167 = vsel %vm335, %v1161, 0
    %1169 = vmatprep.subr.mxu0 0.0
    %1170 = vmatpush1.msra.mxu0 0.0
    %1171 = vmatprep.subr.mxu0 0.0
    %1172 = vmatpush1.msra.mxu0 0.0
    %1173 = vmatprep.subr.mxu0 0.0
    %1174 = vmatpush1.msra.mxu0 0.0
    %1175 = vmatprep.subr.mxu0 0.0
    %1176 = vmatpush1.msra.mxu0 0.0
    %1177 = vmatprep.subr.mxu0 0.0
    %1178 = vmatpush1.msra.mxu0 0.0
    %1179 = vmatprep.subr.mxu0 0.0
    %1180 = vmatpush1.msra.mxu0 0.0
    %1181 = vmatprep.subr.mxu0 0.0
    %1182 = vmatpush1.msra.mxu0 0.0
    %1183 = vmatprep.subr.mxu0 0.0
    %1184 = vmatpush1.msra.mxu0 0.0
    %1185 = vmatprep.subr.mxu0 0.0
    %1186 = vmatpush1.msra.mxu0 0.0
    %1187 = vmatprep.subr.mxu0 0.0
    %1188 = vmatpush1.msra.mxu0 0.0
    %1189 = vmatprep.subr.mxu0 0.0
    %1190 = vmatpush1.msra.mxu0 0.0
    %1191 = vmatprep.subr.mxu0 0.0
    %1192 = vmatpush1.msra.mxu0 0.0
    %1193 = vmatprep.subr.mxu0 0.0
    %1194 = vmatpush1.msra.mxu0 %v622
    %1195 = vmatprep.subr.mxu0 0.0
    %1196 = vmatpush1.msra.mxu0 %v621
    %1197 = vmatprep.subr.mxu0 0.0
    %1198 = vmatpush1.msra.mxu0 %v620
    %1199 = vmatprep.subr.mxu0 0.0
    %1200 = vmatpush1.msra.mxu0 %v619
    %1201 = vmatprep.subr.mxu0 0.0
    %1202 = vmatpush2.msra.mxu0 0.0
    %1203 = vmatprep.subr.mxu0 0.0
    %1204 = vmatpush2.msra.mxu0 0.0
    %1205 = vmatprep.subr.mxu0 0.0
    %1206 = vmatpush2.msra.mxu0 0.0
    %1207 = vmatprep.subr.mxu0 0.0
    %1208 = vmatpush2.msra.mxu0 0.0
    %1209 = vmatprep.subr.mxu0 0.0
    %1210 = vmatpush2.msra.mxu0 0.0
    %1211 = vmatprep.subr.mxu0 0.0
    %1212 = vmatpush2.msra.mxu0 0.0
    %1213 = vmatprep.subr.mxu0 0.0
    %1214 = vmatpush2.msra.mxu0 0.0
    %1215 = vmatprep.subr.mxu0 0.0
    %1216 = vmatpush2.msra.mxu0 0.0
    %1217 = vmatprep.subr.mxu0 0.0
    %1218 = vmatpush2.msra.mxu0 0.0
    %1219 = vmatprep.subr.mxu0 0.0
    %1220 = vmatpush2.msra.mxu0 0.0
    %1221 = vmatprep.subr.mxu0 0.0
    %1222 = vmatpush2.msra.mxu0 0.0
    %1223 = vmatprep.subr.mxu0 0.0
    %1224 = vmatpush2.msra.mxu0 0.0
    %1225 = vmatprep.subr.mxu0 0.0
    %1226 = vmatpush2.msra.mxu0 0.0
    %1227 = vmatprep.subr.mxu0 0.0
    %1228 = vmatpush2.msra.mxu0 0.0
    %1229 = vmatprep.subr.mxu0 0.0
    %1230 = vmatpush2.msra.mxu0 0.0
    %1231 = vmatprep.subr.mxu0 0.0
    %1232 = vmatpush2.msra.mxu0 0.0
    %1233 = vmatprep.mubr.f32.mxu0 0.0
    %1234 = vmatmul.mubr.f32.gmra.mxu0 %v1167
    %v1235 = vpop.f32.mrf.mxu0
    %v1236 = vadd.f32 %v627, %v1235
    %v1237 = vpop.f32.mrf.mxu0
    %1238 = vdwg.mxu0
    %v1239 = vadd.f32 %v1166, %v1236
    %v1240 = vxor.u32 %v1239, 2147483648
    %v1241 = vmul.f32 %v1240, 1.442695
    %v1242 = vpow.pop %v1241
    %v1243 = vadd.f32 %v1242, 1.0
    %v1244 = vrcp.pop %v1243
    %v1245 = vmul.f32 1.0, %v1244
    %1247 = vrot.lane.b32.xlu0 %v1236, 64
    %v1248 = vpop.permute.xlu0 %1247
    %v1250 = vmul.f32 %v1245, %v1248
    %1252 = vrot.lane.b32.xlu0 %v1250, 64
    %v1253 = vpop.permute.xlu0 %1252
    %v1255 = vadd.f32 %v1166, %v1253
    %v1256 = vtanh.pop %v1255
    %v1257 = vsub.f32 1.0, %v1245
    %1259 = vrot.lane.b32.xlu0 %v1256, 96
    %v1260 = vpop.permute.xlu0 %1259
    %v1262 = vmul.f32 %v1257, %v1260
    %v1263 = vmul.f32 %v1245, %v1158
    %v1264 = vadd.f32 %v1262, %v1263
    %1266 = vrot.lane.b32.xlu0 %v1264, 96
    %v1267 = vpop.permute.xlu0 %1266
    %v1269 = vsel %vm335, %v1267, 0.0
    %1270 = vadd.xlane.f32.xlu0 %v1269
    %v1271 = vpop.xlane.xlu0 %1270
    %v1272 = vmul.f32 %v1271, %v360
    %v1273 = vsub.f32 %v1264, %v1272
    %v1274 = vmul.f32 %v1273, %v1273
    %1276 = vrot.lane.b32.xlu0 %v1274, 96
    %v1277 = vpop.permute.xlu0 %1276
    %v1279 = vsel %vm335, %v1277, 0.0
    %1280 = vadd.xlane.f32.xlu0 %v1279
    %v1281 = vpop.xlane.xlu0 %1280
    %v1282 = vmul.f32 %v1281, %v360
    %v1283 = vadd.f32 %v1282, 1e-05
    %v1284 = vrsqrt.pop %v1283
    %v1285 = vmul.f32 %v1273, %v1284
    %v1286 = vmul.f32 %v1285, %v765
    %v1287 = vadd.f32 %v1286, %v770
    %1289 = vrot.lane.b32.xlu0 %v1287, 96
    %v1290 = vpop.permute.xlu0 %1289
    %s1292 = scalar_lea.vmem [#allocation3], 32
    %1293 = vst.msk [vmem:[%s1292] sm:$0xff] %vm335, %v1290
    %s1294 = scalar_lea.vmem [#allocation2], 40
    %v1295 = vld [vmem:[%s1294] sm:$0xff]
    %v1296 = vsel %vm335, %v1290, 0
    %1298 = vmatprep.subr.mxu0 0.0
    %1299 = vmatpush1.msra.mxu0 0.0
    %1300 = vmatprep.subr.mxu0 0.0
    %1301 = vmatpush1.msra.mxu0 0.0
    %1302 = vmatprep.subr.mxu0 0.0
    %1303 = vmatpush1.msra.mxu0 0.0
    %1304 = vmatprep.subr.mxu0 0.0
    %1305 = vmatpush1.msra.mxu0 0.0
    %1306 = vmatprep.subr.mxu0 0.0
    %1307 = vmatpush1.msra.mxu0 0.0
    %1308 = vmatprep.subr.mxu0 0.0
    %1309 = vmatpush1.msra.mxu0 0.0
    %1310 = vmatprep.subr.mxu0 0.0
    %1311 = vmatpush1.msra.mxu0 0.0
    %1312 = vmatprep.subr.mxu0 0.0
    %1313 = vmatpush1.msra.mxu0 0.0
    %1314 = vmatprep.subr.mxu0 0.0
    %1315 = vmatpush1.msra.mxu0 0.0
    %1316 = vmatprep.subr.mxu0 0.0
    %1317 = vmatpush1.msra.mxu0 0.0
    %1318 = vmatprep.subr.mxu0 0.0
    %1319 = vmatpush1.msra.mxu0 0.0
    %1320 = vmatprep.subr.mxu0 0.0
    %1321 = vmatpush1.msra.mxu0 0.0
    %1322 = vmatprep.subr.mxu0 0.0
    %1323 = vmatpush1.msra.mxu0 %v622
    %1324 = vmatprep.subr.mxu0 0.0
    %1325 = vmatpush1.msra.mxu0 %v621
    %1326 = vmatprep.subr.mxu0 0.0
    %1327 = vmatpush1.msra.mxu0 %v620
    %1328 = vmatprep.subr.mxu0 0.0
    %1329 = vmatpush1.msra.mxu0 %v619
    %1330 = vmatprep.subr.mxu0 0.0
    %1331 = vmatpush2.msra.mxu0 0.0
    %1332 = vmatprep.subr.mxu0 0.0
    %1333 = vmatpush2.msra.mxu0 0.0
    %1334 = vmatprep.subr.mxu0 0.0
    %1335 = vmatpush2.msra.mxu0 0.0
    %1336 = vmatprep.subr.mxu0 0.0
    %1337 = vmatpush2.msra.mxu0 0.0
    %1338 = vmatprep.subr.mxu0 0.0
    %1339 = vmatpush2.msra.mxu0 0.0
    %1340 = vmatprep.subr.mxu0 0.0
    %1341 = vmatpush2.msra.mxu0 0.0
    %1342 = vmatprep.subr.mxu0 0.0
    %1343 = vmatpush2.msra.mxu0 0.0
    %1344 = vmatprep.subr.mxu0 0.0
    %1345 = vmatpush2.msra.mxu0 0.0
    %1346 = vmatprep.subr.mxu0 0.0
    %1347 = vmatpush2.msra.mxu0 0.0
    %1348 = vmatprep.subr.mxu0 0.0
    %1349 = vmatpush2.msra.mxu0 0.0
    %1350 = vmatprep.subr.mxu0 0.0
    %1351 = vmatpush2.msra.mxu0 0.0
    %1352 = vmatprep.subr.mxu0 0.0
    %1353 = vmatpush2.msra.mxu0 0.0
    %1354 = vmatprep.subr.mxu0 0.0
    %1355 = vmatpush2.msra.mxu0 0.0
    %1356 = vmatprep.subr.mxu0 0.0
    %1357 = vmatpush2.msra.mxu0 0.0
    %1358 = vmatprep.subr.mxu0 0.0
    %1359 = vmatpush2.msra.mxu0 0.0
    %1360 = vmatprep.subr.mxu0 0.0
    %1361 = vmatpush2.msra.mxu0 0.0
    %1362 = vmatprep.mubr.f32.mxu0 0.0
    %1363 = vmatmul.mubr.f32.gmra.mxu0 %v1296
    %v1364 = vpop.f32.mrf.mxu0
    %v1365 = vadd.f32 %v627, %v1364
    %v1366 = vpop.f32.mrf.mxu0
    %1367 = vdwg.mxu0
    %v1368 = vadd.f32 %v1295, %v1365
    %v1369 = vxor.u32 %v1368, 2147483648
    %v1370 = vmul.f32 %v1369, 1.442695
    %v1371 = vpow.pop %v1370
    %v1372 = vadd.f32 %v1371, 1.0
    %v1373 = vrcp.pop %v1372
    %v1374 = vmul.f32 1.0, %v1373
    %1376 = vrot.lane.b32.xlu0 %v1365, 64
    %v1377 = vpop.permute.xlu0 %1376
    %v1379 = vmul.f32 %v1374, %v1377
    %1381 = vrot.lane.b32.xlu0 %v1379, 64
    %v1382 = vpop.permute.xlu0 %1381
    %v1384 = vadd.f32 %v1295, %v1382
    %v1385 = vtanh.pop %v1384
    %v1386 = vsub.f32 1.0, %v1374
    %1388 = vrot.lane.b32.xlu0 %v1385, 96
    %v1389 = vpop.permute.xlu0 %1388
    %v1391 = vmul.f32 %v1386, %v1389
    %v1392 = vmul.f32 %v1374, %v1287
    %v1393 = vadd.f32 %v1391, %v1392
    %1395 = vrot.lane.b32.xlu0 %v1393, 96
    %v1396 = vpop.permute.xlu0 %1395
    %v1398 = vsel %vm335, %v1396, 0.0
    %1399 = vadd.xlane.f32.xlu0 %v1398
    %v1400 = vpop.xlane.xlu0 %1399
    %v1401 = vmul.f32 %v1400, %v360
    %v1402 = vsub.f32 %v1393, %v1401
    %v1403 = vmul.f32 %v1402, %v1402
    %1405 = vrot.lane.b32.xlu0 %v1403, 96
    %v1406 = vpop.permute.xlu0 %1405
    %v1408 = vsel %vm335, %v1406, 0.0
    %1409 = vadd.xlane.f32.xlu0 %v1408
    %v1410 = vpop.xlane.xlu0 %1409
    %v1411 = vmul.f32 %v1410, %v360
    %v1412 = vadd.f32 %v1411, 1e-05
    %v1413 = vrsqrt.pop %v1412
    %v1414 = vmul.f32 %v1402, %v1413
    %v1415 = vmul.f32 %v1414, %v765
    %v1416 = vadd.f32 %v1415, %v770
    %1418 = vrot.lane.b32.xlu0 %v1416, 96
    %v1419 = vpop.permute.xlu0 %1418
    %s1421 = scalar_lea.vmem [#allocation3], 40
    %1422 = vst.msk [vmem:[%s1421] sm:$0xff] %vm335, %v1419
    %s1423 = scalar_lea.vmem [#allocation2], 48
    %v1424 = vld [vmem:[%s1423] sm:$0xff]
    %v1425 = vsel %vm335, %v1419, 0
    %1427 = vmatprep.subr.mxu0 0.0
    %1428 = vmatpush1.msra.mxu0 0.0
    %1429 = vmatprep.subr.mxu0 0.0
    %1430 = vmatpush1.msra.mxu0 0.0
    %1431 = vmatprep.subr.mxu0 0.0
    %1432 = vmatpush1.msra.mxu0 0.0
    %1433 = vmatprep.subr.mxu0 0.0
    %1434 = vmatpush1.msra.mxu0 0.0
    %1435 = vmatprep.subr.mxu0 0.0
    %1436 = vmatpush1.msra.mxu0 0.0
    %1437 = vmatprep.subr.mxu0 0.0
    %1438 = vmatpush1.msra.mxu0 0.0
    %1439 = vmatprep.subr.mxu0 0.0
    %1440 = vmatpush1.msra.mxu0 0.0
    %1441 = vmatprep.subr.mxu0 0.0
    %1442 = vmatpush1.msra.mxu0 0.0
    %1443 = vmatprep.subr.mxu0 0.0
    %1444 = vmatpush1.msra.mxu0 0.0
    %1445 = vmatprep.subr.mxu0 0.0
    %1446 = vmatpush1.msra.mxu0 0.0
    %1447 = vmatprep.subr.mxu0 0.0
    %1448 = vmatpush1.msra.mxu0 0.0
    %1449 = vmatprep.subr.mxu0 0.0
    %1450 = vmatpush1.msra.mxu0 0.0
    %1451 = vmatprep.subr.mxu0 0.0
    %1452 = vmatpush1.msra.mxu0 %v622
    %1453 = vmatprep.subr.mxu0 0.0
    %1454 = vmatpush1.msra.mxu0 %v621
    %1455 = vmatprep.subr.mxu0 0.0
    %1456 = vmatpush1.msra.mxu0 %v620
    %1457 = vmatprep.subr.mxu0 0.0
    %1458 = vmatpush1.msra.mxu0 %v619
    %1459 = vmatprep.subr.mxu0 0.0
    %1460 = vmatpush2.msra.mxu0 0.0
    %1461 = vmatprep.subr.mxu0 0.0
    %1462 = vmatpush2.msra.mxu0 0.0
    %1463 = vmatprep.subr.mxu0 0.0
    %1464 = vmatpush2.msra.mxu0 0.0
    %1465 = vmatprep.subr.mxu0 0.0
    %1466 = vmatpush2.msra.mxu0 0.0
    %1467 = vmatprep.subr.mxu0 0.0
    %1468 = vmatpush2.msra.mxu0 0.0
    %1469 = vmatprep.subr.mxu0 0.0
    %1470 = vmatpush2.msra.mxu0 0.0
    %1471 = vmatprep.subr.mxu0 0.0
    %1472 = vmatpush2.msra.mxu0 0.0
    %1473 = vmatprep.subr.mxu0 0.0
    %1474 = vmatpush2.msra.mxu0 0.0
    %1475 = vmatprep.subr.mxu0 0.0
    %1476 = vmatpush2.msra.mxu0 0.0
    %1477 = vmatprep.subr.mxu0 0.0
    %1478 = vmatpush2.msra.mxu0 0.0
    %1479 = vmatprep.subr.mxu0 0.0
    %1480 = vmatpush2.msra.mxu0 0.0
    %1481 = vmatprep.subr.mxu0 0.0
    %1482 = vmatpush2.msra.mxu0 0.0
    %1483 = vmatprep.subr.mxu0 0.0
    %1484 = vmatpush2.msra.mxu0 0.0
    %1485 = vmatprep.subr.mxu0 0.0
    %1486 = vmatpush2.msra.mxu0 0.0
    %1487 = vmatprep.subr.mxu0 0.0
    %1488 = vmatpush2.msra.mxu0 0.0
    %1489 = vmatprep.subr.mxu0 0.0
    %1490 = vmatpush2.msra.mxu0 0.0
    %1491 = vmatprep.mubr.f32.mxu0 0.0
    %1492 = vmatmul.mubr.f32.gmra.mxu0 %v1425
    %v1493 = vpop.f32.mrf.mxu0
    %v1494 = vadd.f32 %v627, %v1493
    %v1495 = vpop.f32.mrf.mxu0
    %1496 = vdwg.mxu0
    %v1497 = vadd.f32 %v1424, %v1494
    %v1498 = vxor.u32 %v1497, 2147483648
    %v1499 = vmul.f32 %v1498, 1.442695
    %v1500 = vpow.pop %v1499
    %v1501 = vadd.f32 %v1500, 1.0
    %v1502 = vrcp.pop %v1501
    %v1503 = vmul.f32 1.0, %v1502
    %1505 = vrot.lane.b32.xlu0 %v1494, 64
    %v1506 = vpop.permute.xlu0 %1505
    %v1508 = vmul.f32 %v1503, %v1506
    %1510 = vrot.lane.b32.xlu0 %v1508, 64
    %v1511 = vpop.permute.xlu0 %1510
    %v1513 = vadd.f32 %v1424, %v1511
    %v1514 = vtanh.pop %v1513
    %v1515 = vsub.f32 1.0, %v1503
    %1517 = vrot.lane.b32.xlu0 %v1514, 96
    %v1518 = vpop.permute.xlu0 %1517
    %v1520 = vmul.f32 %v1515, %v1518
    %v1521 = vmul.f32 %v1503, %v1416
    %v1522 = vadd.f32 %v1520, %v1521
    %1524 = vrot.lane.b32.xlu0 %v1522, 96
    %v1525 = vpop.permute.xlu0 %1524
    %v1527 = vsel %vm335, %v1525, 0.0
    %1528 = vadd.xlane.f32.xlu0 %v1527
    %v1529 = vpop.xlane.xlu0 %1528
    %v1530 = vmul.f32 %v1529, %v360
    %v1531 = vsub.f32 %v1522, %v1530
    %v1532 = vmul.f32 %v1531, %v1531
    %1534 = vrot.lane.b32.xlu0 %v1532, 96
    %v1535 = vpop.permute.xlu0 %1534
    %v1537 = vsel %vm335, %v1535, 0.0
    %1538 = vadd.xlane.f32.xlu0 %v1537
    %v1539 = vpop.xlane.xlu0 %1538
    %v1540 = vmul.f32 %v1539, %v360
    %v1541 = vadd.f32 %v1540, 1e-05
    %v1542 = vrsqrt.pop %v1541
    %v1543 = vmul.f32 %v1531, %v1542
    %v1544 = vmul.f32 %v1543, %v765
    %v1545 = vadd.f32 %v1544, %v770
    %1547 = vrot.lane.b32.xlu0 %v1545, 96
    %v1548 = vpop.permute.xlu0 %1547
    %s1550 = scalar_lea.vmem [#allocation3], 48
    %1551 = vst.msk [vmem:[%s1550] sm:$0xff] %vm335, %v1548
    %s1552 = scalar_lea.vmem [#allocation2], 56
    %v1553 = vld [vmem:[%s1552] sm:$0xff]
    %v1554 = vsel %vm335, %v1548, 0
    %1556 = vmatprep.subr.mxu0 0.0
    %1557 = vmatpush1.msra.mxu0 0.0
    %1558 = vmatprep.subr.mxu0 0.0
    %1559 = vmatpush1.msra.mxu0 0.0
    %1560 = vmatprep.subr.mxu0 0.0
    %1561 = vmatpush1.msra.mxu0 0.0
    %1562 = vmatprep.subr.mxu0 0.0
    %1563 = vmatpush1.msra.mxu0 0.0
    %1564 = vmatprep.subr.mxu0 0.0
    %1565 = vmatpush1.msra.mxu0 0.0
    %1566 = vmatprep.subr.mxu0 0.0
    %1567 = vmatpush1.msra.mxu0 0.0
    %1568 = vmatprep.subr.mxu0 0.0
    %1569 = vmatpush1.msra.mxu0 0.0
    %1570 = vmatprep.subr.mxu0 0.0
    %1571 = vmatpush1.msra.mxu0 0.0
    %1572 = vmatprep.subr.mxu0 0.0
    %1573 = vmatpush1.msra.mxu0 0.0
    %1574 = vmatprep.subr.mxu0 0.0
    %1575 = vmatpush1.msra.mxu0 0.0
    %1576 = vmatprep.subr.mxu0 0.0
    %1577 = vmatpush1.msra.mxu0 0.0
    %1578 = vmatprep.subr.mxu0 0.0
    %1579 = vmatpush1.msra.mxu0 0.0
    %1580 = vmatprep.subr.mxu0 0.0
    %1581 = vmatpush1.msra.mxu0 %v622
    %1582 = vmatprep.subr.mxu0 0.0
    %1583 = vmatpush1.msra.mxu0 %v621
    %1584 = vmatprep.subr.mxu0 0.0
    %1585 = vmatpush1.msra.mxu0 %v620
    %1586 = vmatprep.subr.mxu0 0.0
    %1587 = vmatpush1.msra.mxu0 %v619
    %1588 = vmatprep.subr.mxu0 0.0
    %1589 = vmatpush2.msra.mxu0 0.0
    %1590 = vmatprep.subr.mxu0 0.0
    %1591 = vmatpush2.msra.mxu0 0.0
    %1592 = vmatprep.subr.mxu0 0.0
    %1593 = vmatpush2.msra.mxu0 0.0
    %1594 = vmatprep.subr.mxu0 0.0
    %1595 = vmatpush2.msra.mxu0 0.0
    %1596 = vmatprep.subr.mxu0 0.0
    %1597 = vmatpush2.msra.mxu0 0.0
    %1598 = vmatprep.subr.mxu0 0.0
    %1599 = vmatpush2.msra.mxu0 0.0
    %1600 = vmatprep.subr.mxu0 0.0
    %1601 = vmatpush2.msra.mxu0 0.0
    %1602 = vmatprep.subr.mxu0 0.0
    %1603 = vmatpush2.msra.mxu0 0.0
    %1604 = vmatprep.subr.mxu0 0.0
    %1605 = vmatpush2.msra.mxu0 0.0
    %1606 = vmatprep.subr.mxu0 0.0
    %1607 = vmatpush2.msra.mxu0 0.0
    %1608 = vmatprep.subr.mxu0 0.0
    %1609 = vmatpush2.msra.mxu0 0.0
    %1610 = vmatprep.subr.mxu0 0.0
    %1611 = vmatpush2.msra.mxu0 0.0
    %1612 = vmatprep.subr.mxu0 0.0
    %1613 = vmatpush2.msra.mxu0 0.0
    %1614 = vmatprep.subr.mxu0 0.0
    %1615 = vmatpush2.msra.mxu0 0.0
    %1616 = vmatprep.subr.mxu0 0.0
    %1617 = vmatpush2.msra.mxu0 0.0
    %1618 = vmatprep.subr.mxu0 0.0
    %1619 = vmatpush2.msra.mxu0 0.0
    %1620 = vmatprep.mubr.f32.mxu0 0.0
    %1621 = vmatmul.mubr.f32.gmra.mxu0 %v1554
    %v1622 = vpop.f32.mrf.mxu0
    %v1623 = vadd.f32 %v627, %v1622
    %v1624 = vpop.f32.mrf.mxu0
    %1625 = vdwg.mxu0
    %v1626 = vadd.f32 %v1553, %v1623
    %v1627 = vxor.u32 %v1626, 2147483648
    %v1628 = vmul.f32 %v1627, 1.442695
    %v1629 = vpow.pop %v1628
    %v1630 = vadd.f32 %v1629, 1.0
    %v1631 = vrcp.pop %v1630
    %v1632 = vmul.f32 1.0, %v1631
    %1634 = vrot.lane.b32.xlu0 %v1623, 64
    %v1635 = vpop.permute.xlu0 %1634
    %v1637 = vmul.f32 %v1632, %v1635
    %1639 = vrot.lane.b32.xlu0 %v1637, 64
    %v1640 = vpop.permute.xlu0 %1639
    %v1642 = vadd.f32 %v1553, %v1640
    %v1643 = vtanh.pop %v1642
    %v1644 = vsub.f32 1.0, %v1632
    %1646 = vrot.lane.b32.xlu0 %v1643, 96
    %v1647 = vpop.permute.xlu0 %1646
    %v1649 = vmul.f32 %v1644, %v1647
    %v1650 = vmul.f32 %v1632, %v1545
    %v1651 = vadd.f32 %v1649, %v1650
    %1653 = vrot.lane.b32.xlu0 %v1651, 96
    %v1654 = vpop.permute.xlu0 %1653
    %v1656 = vsel %vm335, %v1654, 0.0
    %1657 = vadd.xlane.f32.xlu0 %v1656
    %v1658 = vpop.xlane.xlu0 %1657
    %v1659 = vmul.f32 %v1658, %v360
    %v1660 = vsub.f32 %v1651, %v1659
    %v1661 = vmul.f32 %v1660, %v1660
    %1663 = vrot.lane.b32.xlu0 %v1661, 96
    %v1664 = vpop.permute.xlu0 %1663
    %v1666 = vsel %vm335, %v1664, 0.0
    %1667 = vadd.xlane.f32.xlu0 %v1666
    %v1668 = vpop.xlane.xlu0 %1667
    %v1669 = vmul.f32 %v1668, %v360
    %v1670 = vadd.f32 %v1669, 1e-05
    %v1671 = vrsqrt.pop %v1670
    %v1672 = vmul.f32 %v1660, %v1671
    %v1673 = vmul.f32 %v1672, %v765
    %v1674 = vadd.f32 %v1673, %v770
    %1676 = vrot.lane.b32.xlu0 %v1674, 96
    %v1677 = vpop.permute.xlu0 %1676
    %s1679 = scalar_lea.vmem [#allocation3], 56
    %1680 = vst.msk [vmem:[%s1679] sm:$0xff] %vm335, %v1677
    %v1681 = vld [vmem:[#allocation3] sm:$0xff]
    %v1682 = vld [vmem:[#allocation3 + $0x8] sm:$0xff]
    %v1683 = vld [vmem:[#allocation3 + $0x10] sm:$0xff]
    %v1684 = vld [vmem:[#allocation3 + $0x18] sm:$0xff]
    %v1685 = vld [vmem:[#allocation3 + $0x20] sm:$0xff]
    %v1686 = vld [vmem:[#allocation3 + $0x28] sm:$0xff]
    %v1687 = vld [vmem:[#allocation3 + $0x30] sm:$0xff]
    %v1688 = vld [vmem:[#allocation3 + $0x38] sm:$0xff]
    %v1689 = vld [vmem:[#allocation7] sm:$0xff]
    %v1690 = vld [vmem:[#allocation7 + $0x8] sm:$0xff]
    %v1691 = vld [vmem:[#allocation7 + $0x10] sm:$0xff]
    %v1692 = vld [vmem:[#allocation7 + $0x18] sm:$0xff]
    %v1693 = vld [vmem:[#allocation10 + $0x7] sm:$0x1]
    %v1694 = vlaneseq
    %v1695 = vshrl.u32 %v1694, 7
    %v1696 = vsub.s32 0, %v1695
    %v1697 = vrot.slane %v1693, %v1696
    %v1699 = vsel %vm335, %v1681, 0
    %v1702 = vsel %vm335, %v1682, 0
    %v1705 = vsel %vm335, %v1683, 0
    %v1708 = vsel %vm335, %v1684, 0
    %v1711 = vsel %vm335, %v1685, 0
    %v1714 = vsel %vm335, %v1686, 0
    %v1717 = vsel %vm335, %v1687, 0
    %v1720 = vsel %vm335, %v1688, 0
    %1722 = vmatprep.subr.mxu0 0.0
    %1723 = vmatpush1.msra.mxu0 0.0
    %1724 = vmatprep.subr.mxu0 0.0
    %1725 = vmatpush1.msra.mxu0 0.0
    %1726 = vmatprep.subr.mxu0 0.0
    %1727 = vmatpush1.msra.mxu0 0.0
    %1728 = vmatprep.subr.mxu0 0.0
    %1729 = vmatpush1.msra.mxu0 0.0
    %1730 = vmatprep.subr.mxu0 0.0
    %1731 = vmatpush1.msra.mxu0 0.0
    %1732 = vmatprep.subr.mxu0 0.0
    %1733 = vmatpush1.msra.mxu0 0.0
    %1734 = vmatprep.subr.mxu0 0.0
    %1735 = vmatpush1.msra.mxu0 0.0
    %1736 = vmatprep.subr.mxu0 0.0
    %1737 = vmatpush1.msra.mxu0 0.0
    %1738 = vmatprep.subr.mxu0 0.0
    %1739 = vmatpush1.msra.mxu0 0.0
    %1740 = vmatprep.subr.mxu0 0.0
    %1741 = vmatpush1.msra.mxu0 0.0
    %1742 = vmatprep.subr.mxu0 0.0
    %1743 = vmatpush1.msra.mxu0 0.0
    %1744 = vmatprep.subr.mxu0 0.0
    %1745 = vmatpush1.msra.mxu0 0.0
    %1746 = vmatprep.subr.mxu0 0.0
    %1747 = vmatpush1.msra.mxu0 %v1692
    %1748 = vmatprep.subr.mxu0 0.0
    %1749 = vmatpush1.msra.mxu0 %v1691
    %1750 = vmatprep.subr.mxu0 0.0
    %1751 = vmatpush1.msra.mxu0 %v1690
    %1752 = vmatprep.subr.mxu0 0.0
    %1753 = vmatpush1.msra.mxu0 %v1689
    %1754 = vmatprep.subr.mxu0 0.0
    %1755 = vmatpush2.msra.mxu0 0.0
    %1756 = vmatprep.subr.mxu0 0.0
    %1757 = vmatpush2.msra.mxu0 0.0
    %1758 = vmatprep.subr.mxu0 0.0
    %1759 = vmatpush2.msra.mxu0 0.0
    %1760 = vmatprep.subr.mxu0 0.0
    %1761 = vmatpush2.msra.mxu0 0.0
    %1762 = vmatprep.subr.mxu0 0.0
    %1763 = vmatpush2.msra.mxu0 0.0
    %1764 = vmatprep.subr.mxu0 0.0
    %1765 = vmatpush2.msra.mxu0 0.0
    %1766 = vmatprep.subr.mxu0 0.0
    %1767 = vmatpush2.msra.mxu0 0.0
    %1768 = vmatprep.subr.mxu0 0.0
    %1769 = vmatpush2.msra.mxu0 0.0
    %1770 = vmatprep.subr.mxu0 0.0
    %1771 = vmatpush2.msra.mxu0 0.0
    %1772 = vmatprep.subr.mxu0 0.0
    %1773 = vmatpush2.msra.mxu0 0.0
    %1774 = vmatprep.subr.mxu0 0.0
    %1775 = vmatpush2.msra.mxu0 0.0
    %1776 = vmatprep.subr.mxu0 0.0
    %1777 = vmatpush2.msra.mxu0 0.0
    %1778 = vmatprep.subr.mxu0 0.0
    %1779 = vmatpush2.msra.mxu0 0.0
    %1780 = vmatprep.subr.mxu0 0.0
    %1781 = vmatpush2.msra.mxu0 0.0
    %1782 = vmatprep.subr.mxu0 0.0
    %1783 = vmatpush2.msra.mxu0 0.0
    %1784 = vmatprep.subr.mxu0 0.0
    %1785 = vmatpush2.msra.mxu0 0.0
    %1786 = vmatprep.mubr.f32.mxu0 0.0
    %1787 = vmatmul.mubr.f32.gmra.mxu0 %v1699
    %v1788 = vpop.f32.mrf.mxu0
    %v1789 = vadd.f32 %v1697, %v1788
    %v1790 = vpop.f32.mrf.mxu0
    %1791 = vmatprep.mubr.f32.mxu0 0.0
    %1792 = vmatmul.mubr.f32.gmra.mxu0 %v1702
    %v1793 = vpop.f32.mrf.mxu0
    %v1794 = vadd.f32 %v1697, %v1793
    %v1795 = vpop.f32.mrf.mxu0
    %1796 = vmatprep.mubr.f32.mxu0 0.0
    %1797 = vmatmul.mubr.f32.gmra.mxu0 %v1705
    %v1798 = vpop.f32.mrf.mxu0
    %v1799 = vadd.f32 %v1697, %v1798
    %v1800 = vpop.f32.mrf.mxu0
    %1801 = vmatprep.mubr.f32.mxu0 0.0
    %1802 = vmatmul.mubr.f32.gmra.mxu0 %v1708
    %v1803 = vpop.f32.mrf.mxu0
    %v1804 = vadd.f32 %v1697, %v1803
    %v1805 = vpop.f32.mrf.mxu0
    %1806 = vmatprep.mubr.f32.mxu0 0.0
    %1807 = vmatmul.mubr.f32.gmra.mxu0 %v1711
    %v1808 = vpop.f32.mrf.mxu0
    %v1809 = vadd.f32 %v1697, %v1808
    %v1810 = vpop.f32.mrf.mxu0
    %1811 = vmatprep.mubr.f32.mxu0 0.0
    %1812 = vmatmul.mubr.f32.gmra.mxu0 %v1714
    %v1813 = vpop.f32.mrf.mxu0
    %v1814 = vadd.f32 %v1697, %v1813
    %v1815 = vpop.f32.mrf.mxu0
    %1816 = vmatprep.mubr.f32.mxu0 0.0
    %1817 = vmatmul.mubr.f32.gmra.mxu0 %v1717
    %v1818 = vpop.f32.mrf.mxu0
    %v1819 = vadd.f32 %v1697, %v1818
    %v1820 = vpop.f32.mrf.mxu0
    %1821 = vmatprep.mubr.f32.mxu0 0.0
    %1822 = vmatmul.mubr.f32.gmra.mxu0 %v1720
    %v1823 = vpop.f32.mrf.mxu0
    %v1824 = vadd.f32 %v1697, %v1823
    %v1825 = vpop.f32.mrf.mxu0
    %1826 = vdwg.mxu0
    %v1827 = vld [vmem:[#allocation10 + $0x8] sm:$0x1]
    %v1828 = vld [vmem:[#allocation10 + $0x9] sm:$0x1]
    %v1829 = vsel %vm335, %v1789, 0.0
    %1830 = vadd.xlane.f32.xlu0 %v1829
    %v1831 = vpop.xlane.xlu0 %1830
    %v1832 = vsel %vm335, %v1794, 0.0
    %1833 = vadd.xlane.f32.xlu0 %v1832
    %v1834 = vpop.xlane.xlu0 %1833
    %v1835 = vsel %vm335, %v1799, 0.0
    %1836 = vadd.xlane.f32.xlu0 %v1835
    %v1837 = vpop.xlane.xlu0 %1836
    %v1838 = vsel %vm335, %v1804, 0.0
    %1839 = vadd.xlane.f32.xlu0 %v1838
    %v1840 = vpop.xlane.xlu0 %1839
    %v1841 = vsel %vm335, %v1809, 0.0
    %1842 = vadd.xlane.f32.xlu0 %v1841
    %v1843 = vpop.xlane.xlu0 %1842
    %v1844 = vsel %vm335, %v1814, 0.0
    %1845 = vadd.xlane.f32.xlu0 %v1844
    %v1846 = vpop.xlane.xlu0 %1845
    %v1847 = vsel %vm335, %v1819, 0.0
    %1848 = vadd.xlane.f32.xlu0 %v1847
    %v1849 = vpop.xlane.xlu0 %1848
    %v1850 = vsel %vm335, %v1824, 0.0
    %1851 = vadd.xlane.f32.xlu0 %v1850
    %v1852 = vpop.xlane.xlu0 %1851
    %v1853 = vmul.f32 %v1831, %v360
    %v1854 = vmul.f32 %v1834, %v360
    %v1855 = vmul.f32 %v1837, %v360
    %v1856 = vmul.f32 %v1840, %v360
    %v1857 = vmul.f32 %v1843, %v360
    %v1858 = vmul.f32 %v1846, %v360
    %v1859 = vmul.f32 %v1849, %v360
    %v1860 = vmul.f32 %v1852, %v360
    %v1861 = vsub.f32 %v1789, %v1853
    %v1862 = vsub.f32 %v1794, %v1854
    %v1863 = vsub.f32 %v1799, %v1855
    %v1864 = vsub.f32 %v1804, %v1856
    %v1865 = vsub.f32 %v1809, %v1857
    %v1866 = vsub.f32 %v1814, %v1858
    %v1867 = vsub.f32 %v1819, %v1859
    %v1868 = vsub.f32 %v1824, %v1860
    %v1869 = vmul.f32 %v1861, %v1861
    %v1870 = vmul.f32 %v1862, %v1862
    %v1871 = vmul.f32 %v1863, %v1863
    %v1872 = vmul.f32 %v1864, %v1864
    %v1873 = vmul.f32 %v1865, %v1865
    %v1874 = vmul.f32 %v1866, %v1866
    %v1875 = vmul.f32 %v1867, %v1867
    %v1876 = vmul.f32 %v1868, %v1868
    %v1877 = vsel %vm335, %v1869, 0.0
    %1878 = vadd.xlane.f32.xlu0 %v1877
    %v1879 = vpop.xlane.xlu0 %1878
    %v1880 = vsel %vm335, %v1870, 0.0
    %1881 = vadd.xlane.f32.xlu0 %v1880
    %v1882 = vpop.xlane.xlu0 %1881
    %v1883 = vsel %vm335, %v1871, 0.0
    %1884 = vadd.xlane.f32.xlu0 %v1883
    %v1885 = vpop.xlane.xlu0 %1884
    %v1886 = vsel %vm335, %v1872, 0.0
    %1887 = vadd.xlane.f32.xlu0 %v1886
    %v1888 = vpop.xlane.xlu0 %1887
    %v1889 = vsel %vm335, %v1873, 0.0
    %1890 = vadd.xlane.f32.xlu0 %v1889
    %v1891 = vpop.xlane.xlu0 %1890
    %v1892 = vsel %vm335, %v1874, 0.0
    %1893 = vadd.xlane.f32.xlu0 %v1892
    %v1894 = vpop.xlane.xlu0 %1893
    %v1895 = vsel %vm335, %v1875, 0.0
    %1896 = vadd.xlane.f32.xlu0 %v1895
    %v1897 = vpop.xlane.xlu0 %1896
    %v1898 = vsel %vm335, %v1876, 0.0
    %1899 = vadd.xlane.f32.xlu0 %v1898
    %v1900 = vpop.xlane.xlu0 %1899
    %v1901 = vmul.f32 %v1879, %v360
    %v1902 = vmul.f32 %v1882, %v360
    %v1903 = vmul.f32 %v1885, %v360
    %v1904 = vmul.f32 %v1888, %v360
    %v1905 = vmul.f32 %v1891, %v360
    %v1906 = vmul.f32 %v1894, %v360
    %v1907 = vmul.f32 %v1897, %v360
    %v1908 = vmul.f32 %v1900, %v360
    %v1909 = vadd.f32 %v1901, 1e-05
    %v1910 = vadd.f32 %v1902, 1e-05
    %v1911 = vadd.f32 %v1903, 1e-05
    %v1912 = vadd.f32 %v1904, 1e-05
    %v1913 = vadd.f32 %v1905, 1e-05
    %v1914 = vadd.f32 %v1906, 1e-05
    %v1915 = vadd.f32 %v1907, 1e-05
    %v1916 = vadd.f32 %v1908, 1e-05
    %v1917 = vrsqrt.pop %v1909
    %v1918 = vrsqrt.pop %v1910
    %v1919 = vrsqrt.pop %v1911
    %v1920 = vrsqrt.pop %v1912
    %v1921 = vrsqrt.pop %v1913
    %v1922 = vrsqrt.pop %v1914
    %v1923 = vrsqrt.pop %v1915
    %v1924 = vrsqrt.pop %v1916
    %v1925 = vmul.f32 %v1861, %v1917
    %v1926 = vmul.f32 %v1862, %v1918
    %v1927 = vmul.f32 %v1863, %v1919
    %v1928 = vmul.f32 %v1864, %v1920
    %v1929 = vmul.f32 %v1865, %v1921
    %v1930 = vmul.f32 %v1866, %v1922
    %v1931 = vmul.f32 %v1867, %v1923
    %v1932 = vmul.f32 %v1868, %v1924
    %v1933 = vlaneseq
    %v1934 = vshrl.u32 %v1933, 7
    %v1935 = vsub.s32 0, %v1934
    %v1936 = vrot.slane %v1827, %v1935
    %v1937 = vmul.f32 %v1925, %v1936
    %v1938 = vmul.f32 %v1926, %v1936
    %v1939 = vmul.f32 %v1927, %v1936
    %v1940 = vmul.f32 %v1928, %v1936
    %v1941 = vmul.f32 %v1929, %v1936
    %v1942 = vmul.f32 %v1930, %v1936
    %v1943 = vmul.f32 %v1931, %v1936
    %v1944 = vmul.f32 %v1932, %v1936
    %v1945 = vlaneseq
    %v1946 = vshrl.u32 %v1945, 7
    %v1947 = vsub.s32 0, %v1946
    %v1948 = vrot.slane %v1828, %v1947
    %v1949 = vadd.f32 %v1937, %v1948
    %v1950 = vadd.f32 %v1938, %v1948
    %v1951 = vadd.f32 %v1939, %v1948
    %v1952 = vadd.f32 %v1940, %v1948
    %v1953 = vadd.f32 %v1941, %v1948
    %v1954 = vadd.f32 %v1942, %v1948
    %v1955 = vadd.f32 %v1943, %v1948
    %v1956 = vadd.f32 %v1944, %v1948
    %v1957 = vmax.f32 %v1949, 0.0
    %v1958 = vmax.f32 %v1950, 0.0
    %v1959 = vmax.f32 %v1951, 0.0
    %v1960 = vmax.f32 %v1952, 0.0
    %v1961 = vmax.f32 %v1953, 0.0
    %v1962 = vmax.f32 %v1954, 0.0
    %v1963 = vmax.f32 %v1955, 0.0
    %v1964 = vmax.f32 %v1956, 0.0
    %v1965 = vld [vmem:[#allocation9] sm:$0xff]
    %v1966 = vld [vmem:[#allocation9 + $0x8] sm:$0xff]
    %v1967 = vld [vmem:[#allocation9 + $0x10] sm:$0xff]
    %v1968 = vld [vmem:[#allocation9 + $0x18] sm:$0xff]
    %v1969 = vld [vmem:[#allocation10 + $0xa] sm:$0x1]
    %v1970 = vlaneseq
    %v1971 = vshrl.u32 %v1970, 7
    %v1972 = vsub.s32 0, %v1971
    %v1973 = vrot.slane %v1969, %v1972
    %v1975 = vsel %vm335, %v1957, 0
    %v1978 = vsel %vm335, %v1958, 0
    %v1981 = vsel %vm335, %v1959, 0
    %v1984 = vsel %vm335, %v1960, 0
    %v1987 = vsel %vm335, %v1961, 0
    %v1990 = vsel %vm335, %v1962, 0
    %v1993 = vsel %vm335, %v1963, 0
    %v1996 = vsel %vm335, %v1964, 0
    %1998 = vmatprep.subr.mxu0 0.0
    %1999 = vmatpush1.msra.mxu0 0.0
    %2000 = vmatprep.subr.mxu0 0.0
    %2001 = vmatpush1.msra.mxu0 0.0
    %2002 = vmatprep.subr.mxu0 0.0
    %2003 = vmatpush1.msra.mxu0 0.0
    %2004 = vmatprep.subr.mxu0 0.0
    %2005 = vmatpush1.msra.mxu0 0.0
    %2006 = vmatprep.subr.mxu0 0.0
    %2007 = vmatpush1.msra.mxu0 0.0
    %2008 = vmatprep.subr.mxu0 0.0
    %2009 = vmatpush1.msra.mxu0 0.0
    %2010 = vmatprep.subr.mxu0 0.0
    %2011 = vmatpush1.msra.mxu0 0.0
    %2012 = vmatprep.subr.mxu0 0.0
    %2013 = vmatpush1.msra.mxu0 0.0
    %2014 = vmatprep.subr.mxu0 0.0
    %2015 = vmatpush1.msra.mxu0 0.0
    %2016 = vmatprep.subr.mxu0 0.0
    %2017 = vmatpush1.msra.mxu0 0.0
    %2018 = vmatprep.subr.mxu0 0.0
    %2019 = vmatpush1.msra.mxu0 0.0
    %2020 = vmatprep.subr.mxu0 0.0
    %2021 = vmatpush1.msra.mxu0 0.0
    %2022 = vmatprep.subr.mxu0 0.0
    %2023 = vmatpush1.msra.mxu0 %v1968
    %2024 = vmatprep.subr.mxu0 0.0
    %2025 = vmatpush1.msra.mxu0 %v1967
    %2026 = vmatprep.subr.mxu0 0.0
    %2027 = vmatpush1.msra.mxu0 %v1966
    %2028 = vmatprep.subr.mxu0 0.0
    %2029 = vmatpush1.msra.mxu0 %v1965
    %2030 = vmatprep.subr.mxu0 0.0
    %2031 = vmatpush2.msra.mxu0 0.0
    %2032 = vmatprep.subr.mxu0 0.0
    %2033 = vmatpush2.msra.mxu0 0.0
    %2034 = vmatprep.subr.mxu0 0.0
    %2035 = vmatpush2.msra.mxu0 0.0
    %2036 = vmatprep.subr.mxu0 0.0
    %2037 = vmatpush2.msra.mxu0 0.0
    %2038 = vmatprep.subr.mxu0 0.0
    %2039 = vmatpush2.msra.mxu0 0.0
    %2040 = vmatprep.subr.mxu0 0.0
    %2041 = vmatpush2.msra.mxu0 0.0
    %2042 = vmatprep.subr.mxu0 0.0
    %2043 = vmatpush2.msra.mxu0 0.0
    %2044 = vmatprep.subr.mxu0 0.0
    %2045 = vmatpush2.msra.mxu0 0.0
    %2046 = vmatprep.subr.mxu0 0.0
    %2047 = vmatpush2.msra.mxu0 0.0
    %2048 = vmatprep.subr.mxu0 0.0
    %2049 = vmatpush2.msra.mxu0 0.0
    %2050 = vmatprep.subr.mxu0 0.0
    %2051 = vmatpush2.msra.mxu0 0.0
    %2052 = vmatprep.subr.mxu0 0.0
    %2053 = vmatpush2.msra.mxu0 0.0
    %2054 = vmatprep.subr.mxu0 0.0
    %2055 = vmatpush2.msra.mxu0 0.0
    %2056 = vmatprep.subr.mxu0 0.0
    %2057 = vmatpush2.msra.mxu0 0.0
    %2058 = vmatprep.subr.mxu0 0.0
    %2059 = vmatpush2.msra.mxu0 0.0
    %2060 = vmatprep.subr.mxu0 0.0
    %2061 = vmatpush2.msra.mxu0 0.0
    %2062 = vmatprep.mubr.f32.mxu0 0.0
    %2063 = vmatmul.mubr.f32.gmra.mxu0 %v1975
    %v2064 = vpop.f32.mrf.mxu0
    %v2065 = vadd.f32 %v1973, %v2064
    %v2066 = vpop.f32.mrf.mxu0
    %2067 = vmatprep.mubr.f32.mxu0 0.0
    %2068 = vmatmul.mubr.f32.gmra.mxu0 %v1978
    %v2069 = vpop.f32.mrf.mxu0
    %v2070 = vadd.f32 %v1973, %v2069
    %v2071 = vpop.f32.mrf.mxu0
    %2072 = vmatprep.mubr.f32.mxu0 0.0
    %2073 = vmatmul.mubr.f32.gmra.mxu0 %v1981
    %v2074 = vpop.f32.mrf.mxu0
    %v2075 = vadd.f32 %v1973, %v2074
    %v2076 = vpop.f32.mrf.mxu0
    %2077 = vmatprep.mubr.f32.mxu0 0.0
    %2078 = vmatmul.mubr.f32.gmra.mxu0 %v1984
    %v2079 = vpop.f32.mrf.mxu0
    %v2080 = vadd.f32 %v1973, %v2079
    %v2081 = vpop.f32.mrf.mxu0
    %2082 = vmatprep.mubr.f32.mxu0 0.0
    %2083 = vmatmul.mubr.f32.gmra.mxu0 %v1987
    %v2084 = vpop.f32.mrf.mxu0
    %v2085 = vadd.f32 %v1973, %v2084
    %v2086 = vpop.f32.mrf.mxu0
    %2087 = vmatprep.mubr.f32.mxu0 0.0
    %2088 = vmatmul.mubr.f32.gmra.mxu0 %v1990
    %v2089 = vpop.f32.mrf.mxu0
    %v2090 = vadd.f32 %v1973, %v2089
    %v2091 = vpop.f32.mrf.mxu0
    %2092 = vmatprep.mubr.f32.mxu0 0.0
    %2093 = vmatmul.mubr.f32.gmra.mxu0 %v1993
    %v2094 = vpop.f32.mrf.mxu0
    %v2095 = vadd.f32 %v1973, %v2094
    %v2096 = vpop.f32.mrf.mxu0
    %2097 = vmatprep.mubr.f32.mxu0 0.0
    %2098 = vmatmul.mubr.f32.gmra.mxu0 %v1996
    %v2099 = vpop.f32.mrf.mxu0
    %v2100 = vadd.f32 %v1973, %v2099
    %v2101 = vpop.f32.mrf.mxu0
    %2102 = vdwg.mxu0
    %v2103 = vsel %vm335, %v1681, 0.0
    %v2104 = vsel %vm335, %v1682, 0.0
    %v2105 = vsel %vm335, %v1683, 0.0
    %v2106 = vsel %vm335, %v1684, 0.0
    %v2107 = vsel %vm335, %v1685, 0.0
    %v2108 = vsel %vm335, %v1686, 0.0
    %v2109 = vsel %vm335, %v1687, 0.0
    %v2110 = vsel %vm335, %v1688, 0.0
    %v2111 = vadd.f32 %v2065, %v2103
    %v2112 = vadd.f32 %v2070, %v2104
    %v2113 = vadd.f32 %v2075, %v2105
    %v2114 = vadd.f32 %v2080, %v2106
    %v2115 = vadd.f32 %v2085, %v2107
    %v2116 = vadd.f32 %v2090, %v2108
    %v2117 = vadd.f32 %v2095, %v2109
    %v2118 = vadd.f32 %v2100, %v2110
    %2119 = vst [vmem:[#allocation12] sm:$0xff] %v2111
    %2120 = vst [vmem:[#allocation12 + $0x8] sm:$0xff] %v2112
    %2121 = vst [vmem:[#allocation12 + $0x10] sm:$0xff] %v2113
    %2122 = vst [vmem:[#allocation12 + $0x18] sm:$0xff] %v2114
    %2123 = vst [vmem:[#allocation12 + $0x20] sm:$0xff] %v2115
    %2124 = vst [vmem:[#allocation12 + $0x28] sm:$0xff] %v2116
    %2125 = vst [vmem:[#allocation12 + $0x30] sm:$0xff] %v2117
    %2126 = vst [vmem:[#allocation12 + $0x38] sm:$0xff] %v2118
    // Predicated region
    $region50: #{tpu_custom_call.1} parent=1 // pred_check
      _
    $region51: #{tpu_custom_call.1} parent=1 // pred_check_branch
      %2128 = sbr.rel (0) target = $region53
    $region52: #{tpu_custom_call.1} parent=1 // pred_region
      %s2130 = ssub.s32 1024, 1024
      %2131 = vsyncadd [#allocation6], %s2130
      %s2132 = sshll.u32 [#allocation12], 4
      %s2133 = int_to_ptr.vmem [resolvable:$true] %s2132
      %2138 = dma.vmem_to_hbm [thread:$0]  %s2133, 1024, %s8, [#allocation6], 128, 128, 8
    $region53: #{tpu_custom_call.1} parent=1 // pred_fallthru
      _
    // Predicated region
    $region54: #{tpu_custom_call.1} parent=1 // pred_check
      _
    $region55: #{tpu_custom_call.1} parent=1 // pred_check_branch
      %2140 = sbr.rel (0) target = $region57
    $region56: #{tpu_custom_call.1} parent=1 // pred_region
      %2141 = dma.done [#allocation6], 1024
    $region57: #{tpu_custom_call.1} parent=1 // pred_fallthru
      _
    %2142 = vsyncpa [#allocation5], 1
    %2143 = vsyncpa [#allocation8], 1
    %2144 = vsyncpa [#allocation11], 1
    %2145 = vsyncpa [#allocation6], 1

</llo_original>
